<compile_context>
chip_gen: v6e
topology: v6e:2x2x1
jax: 0.10.0
libtpu: 0.0.40
codegen_flags: <defaults>
</compile_context>

<pallas_src>
import functools
import numpy as np
import jax
import jax.numpy as jnp
from jax.experimental import pallas as pl
from jax.experimental.pallas import tpu as pltpu

EPS = 1e-5  # LayerNorm eps (PyTorch default)


# ----------------------------------------------------------------------------
# Kernel 1: one CLIP ResidualAttentionBlock (causal MHA + QuickGELU MLP)
# + fused exposed-layer epilogue (cls gather and (sum - cls)/(S-1)).
# Grid over batch; one batch element per grid step; weights resident in VMEM.
# ----------------------------------------------------------------------------
def _block_kernel(idx_ref,                                   # scalar prefetch (SMEM)
                  x_ref, ln1_g, ln1_b, w_qkv, b_qkv, w_out, b_out,
                  ln2_g, ln2_b, w_fc, b_fc, w_proj, b_proj,  # inputs
                  o_ref, cls_ref, avg_ref,                   # outputs
                  *, n_heads):
    x = x_ref[0]                                             # [S, D] residual stream, f32
    S, D = x.shape
    dh = D // n_heads
    cdt = w_qkv.dtype                                        # bf16 compute dtype

    def layer_norm(v, g_ref, beta_ref):
        mu = jnp.mean(v, axis=-1, keepdims=True)
        var = jnp.mean((v - mu) ** 2, axis=-1, keepdims=True)
        return (v - mu) * jax.lax.rsqrt(var + EPS) * g_ref[0] + beta_ref[0]

    # --- attention branch ---
    h = layer_norm(x, ln1_g, ln1_b)
    qkv = jnp.dot(h.astype(cdt), w_qkv[...],
                  preferred_element_type=jnp.float32) + b_qkv[0]
    scale = 1.0 / float(dh) ** 0.5
    q = qkv[:, :D] * scale                                   # fold 1/sqrt(dh) into q
    k = qkv[:, D:2 * D]
    v = qkv[:, 2 * D:]

    # additive causal mask, computed once per block (not per head)
    row = jax.lax.broadcasted_iota(jnp.int32, (S, S), 0)
    col = jax.lax.broadcasted_iota(jnp.int32, (S, S), 1)
    mask_add = jnp.where(col <= row, 0.0, -1e9).astype(jnp.float32)

    # per-head accumulation through W_out: acc += head_out_h @ W_out[h_slice, :]
    acc = jnp.zeros((S, D), jnp.float32)
    for hd in range(n_heads):                                # static unroll over heads
        sl = slice(hd * dh, (hd + 1) * dh)
        qh = q[:, sl].astype(cdt)
        kh = k[:, sl].astype(cdt)
        vh = v[:, sl].astype(cdt)
        s = jax.lax.dot_general(qh, kh, (((1,), (1,)), ((), ())),
                                preferred_element_type=jnp.float32)
        s = s + mask_add
        s = s - jnp.max(s, axis=-1, keepdims=True)
        e = jnp.exp(s)
        p = e * pl.reciprocal(jnp.sum(e, axis=-1, keepdims=True), approx=True)
        hout = jnp.dot(p.astype(cdt), vh, preferred_element_type=jnp.float32)
        acc = acc + jnp.dot(hout.astype(cdt), w_out[sl, :],
                            preferred_element_type=jnp.float32)
    x = x + acc + b_out[0]                                   # residual add in f32

    # --- MLP branch ---
    h2 = layer_norm(x, ln2_g, ln2_b)
    f = jnp.dot(h2.astype(cdt), w_fc[...],
                preferred_element_type=jnp.float32) + b_fc[0]
    f = f * jax.nn.sigmoid(1.702 * f)                        # QuickGELU
    m = jnp.dot(f.astype(cdt), w_proj[...],
                preferred_element_type=jnp.float32) + b_proj[0]
    x = x + m
    o_ref[0] = x.astype(o_ref.dtype)

    # --- fused exposed-layer epilogue: cls row + (sum - cls) / (S - 1) ---
    idx = idx_ref[pl.program_id(0)]
    cls_row = o_ref[0, pl.ds(idx, 1), :].astype(jnp.float32)  # [1, D]
    total = jnp.sum(x, axis=0, keepdims=True)
    # TODO(synk): PyTorch performs this reduction in float64; TPU has no f64,
    # so it is computed in float32 here.
    cls_ref[0] = cls_row.astype(cls_ref.dtype)
    avg_ref[0] = ((total - cls_row) / jnp.float32(S - 1)).astype(avg_ref.dtype)


def transformer_block(x, p, cls_idx, *, n_heads):
    B, S, D = x.shape
    bf16 = jnp.bfloat16
    weights = [p['ln1_g'], p['ln1_b'],
               p['w_qkv'].astype(bf16), p['b_qkv'],
               p['w_out'].astype(bf16), p['b_out'],
               p['ln2_g'], p['ln2_b'],
               p['w_fc'].astype(bf16), p['b_fc'],
               p['w_proj'].astype(bf16), p['b_proj']]
    # Whole-array VMEM specs for weights: resident once (no per-step double-buffering).
    grid_spec = pltpu.PrefetchScalarGridSpec(
        num_scalar_prefetch=1,
        grid=(B,),
        in_specs=[pl.BlockSpec((1, S, D), lambda b, idx: (b, 0, 0))]
                 + [pl.BlockSpec(memory_space=pltpu.MemorySpace.VMEM)] * len(weights),
        out_specs=(pl.BlockSpec((1, S, D), lambda b, idx: (b, 0, 0)),
                   pl.BlockSpec((1, 1, D), lambda b, idx: (b, 0, 0)),
                   pl.BlockSpec((1, 1, D), lambda b, idx: (b, 0, 0))),
    )
    x_new, cls, avg = pl.pallas_call(
        functools.partial(_block_kernel, n_heads=n_heads),
        out_shape=(jax.ShapeDtypeStruct((B, S, D), x.dtype),
                   jax.ShapeDtypeStruct((B, 1, D), x.dtype),
                   jax.ShapeDtypeStruct((B, 1, D), x.dtype)),
        grid_spec=grid_spec,
        compiler_params=pltpu.CompilerParams(
            dimension_semantics=("parallel",),      # batch axis -> megacore/2-TC split
            vmem_limit_bytes=48 * 1024 * 1024),
    )(cls_idx, x, *weights)
    return x_new, cls[:, 0, :], avg[:, 0, :]


# ----------------------------------------------------------------------------
# Kernel 2: ln_final on the cls rows ([B, D] only) + text_projection matmul
# ----------------------------------------------------------------------------
def _final_kernel(x_ref, g_ref, b_ref, proj_ref, o_ref):
    x = x_ref[...]                                           # [B, D] cls rows, f32
    mu = jnp.mean(x, axis=-1, keepdims=True)
    var = jnp.mean((x - mu) ** 2, axis=-1, keepdims=True)
    ln = (x - mu) * jax.lax.rsqrt(var + EPS) * g_ref[0] + b_ref[0]
    o_ref[...] = jnp.dot(ln.astype(proj_ref.dtype), proj_ref[...],
                         preferred_element_type=jnp.float32).astype(o_ref.dtype)


def final_projection(cls_rows, lnf_g, lnf_b, proj):
    B, _ = cls_rows.shape
    E = proj.shape[1]
    return pl.pallas_call(
        _final_kernel,
        out_shape=jax.ShapeDtypeStruct((B, E), cls_rows.dtype),
        in_specs=[pl.BlockSpec(memory_space=pltpu.MemorySpace.VMEM)] * 4,
        out_specs=pl.BlockSpec(memory_space=pltpu.MemorySpace.VMEM),
    )(cls_rows, lnf_g, lnf_b, proj.astype(jnp.bfloat16))


# ----------------------------------------------------------------------------
# Full ExposedTextEncoder forward
# ----------------------------------------------------------------------------
def exposed_text_encoder(text, params, *, n_heads, num_layers_exposed):
    # Glue: embedding gather + positional add (XLA fuses the broadcast add into the
    # gather; a standalone Pallas elementwise kernel would add an HBM round trip).
    x = jnp.take(params['tok_emb'], text, axis=0) + params['pos_emb']
    cls_idx = jnp.argmax(text, axis=-1).astype(jnp.int32)    # glue

    n_layers = len(params['layers'])
    intermediate = []
    cls = None
    for l, p in enumerate(params['layers']):
        x, cls, avg = transformer_block(x, p, cls_idx, n_heads=n_heads)   # Pallas
        if l >= n_layers - num_layers_exposed:                            # exposed layers
            intermediate.append({'cls': cls, 'avg': avg})

    # ln_final is per-row, so LN(gather(x)) == gather(LN(x)); only cls rows needed.
    emb = final_projection(cls, params['lnf_g'], params['lnf_b'],
                           params['proj'])                                # Pallas
    exposed_outputs = {'intermediate': intermediate, 'embedding': emb}
    return emb, exposed_outputs


# ----------------------------------------------------------------------------
# Pure-JAX f32 reference (for correctness check only)
# ----------------------------------------------------------------------------
def _ref_ln(v, g, bt):
    mu = v.mean(-1, keepdims=True)
    var = ((v - mu) ** 2).mean(-1, keepdims=True)
    return (v - mu) / jnp.sqrt(var + EPS) * g[0] + bt[0]


def _ref_block(x, p, n_heads):
    B, S, D = x.shape
    dh = D // n_heads
    h = _ref_ln(x, p['ln1_g'], p['ln1_b'])
    qkv = h @ p['w_qkv'] + p['b_qkv'][0]
    q, k, v = jnp.split(qkv, 3, axis=-1)
    rs = lambda t: t.reshape(B, S, n_heads, dh).transpose(0, 2, 1, 3)
    q, k, v = rs(q), rs(k), rs(v)
    s = jnp.einsum('bhqd,bhkd->bhqk', q, k) / jnp.sqrt(jnp.float32(dh))
    mask = jnp.tril(jnp.ones((S, S), bool))
    s = jnp.where(mask, s, -jnp.inf)
    a = jnp.einsum('bhqk,bhkd->bhqd', jax.nn.softmax(s, axis=-1), v)
    a = a.transpose(0, 2, 1, 3).reshape(B, S, D)
    x = x + a @ p['w_out'] + p['b_out'][0]
    h2 = _ref_ln(x, p['ln2_g'], p['ln2_b'])
    f = h2 @ p['w_fc'] + p['b_fc'][0]
    f = f * jax.nn.sigmoid(1.702 * f)
    return x + f @ p['w_proj'] + p['b_proj'][0]


def _ref_encoder(text, params, n_heads, num_layers_exposed):
    x = params['tok_emb'][text] + params['pos_emb']
    idx = jnp.argmax(text, axis=-1)
    B, S, D = x.shape
    inter = []
    n_layers = len(params['layers'])
    for l, p in enumerate(params['layers']):
        x = _ref_block(x, p, n_heads)
        if l >= n_layers - num_layers_exposed:
            c = x[jnp.arange(B), idx]
            a = (x.sum(axis=1) - c) / (S - 1)
            inter.append((c, a))
    xr = x[jnp.arange(B), idx]
    xr = _ref_ln(xr, params['lnf_g'], params['lnf_b'])
    return xr @ params['proj'], inter


# ----------------------------------------------------------------------------
# main
# ----------------------------------------------------------------------------
if __name__ == "__main__":
    B, S, D, H, E = 2, 8, 32, 4, 32
    VOCAB = 64
    N_LAYERS, N_EXPOSED = 3, 2

    key = jax.random.PRNGKey(0)
    ks = iter(jax.random.split(key, 8 + N_LAYERS * 12))
    nrm = lambda shape, scale: scale * jax.random.normal(next(ks), shape, dtype=jnp.float32)

    params = {
        'tok_emb': nrm((VOCAB, D), 0.2),
        'pos_emb': nrm((S, D), 0.05),
        'lnf_g': 1.0 + nrm((1, D), 0.02),
        'lnf_b': nrm((1, D), 0.02),
        'proj': nrm((D, E), 0.1),
        'layers': [],
    }
    for _ in range(N_LAYERS):
        params['layers'].append({
            'ln1_g': 1.0 + nrm((1, D), 0.02), 'ln1_b': nrm((1, D), 0.02),
            'w_qkv': nrm((D, 3 * D), 0.08),   'b_qkv': nrm((1, 3 * D), 0.02),
            'w_out': nrm((D, D), 0.08),       'b_out': nrm((1, D), 0.02),
            'ln2_g': 1.0 + nrm((1, D), 0.02), 'ln2_b': nrm((1, D), 0.02),
            'w_fc': nrm((D, 4 * D), 0.08),    'b_fc': nrm((1, 4 * D), 0.02),
            'w_proj': nrm((4 * D, D), 0.08),  'b_proj': nrm((1, D), 0.02),
        })

    text = jax.random.randint(jax.random.PRNGKey(1), (B, S), 0, VOCAB, dtype=jnp.int32)

    emb, exposed = exposed_text_encoder(
        text, params, n_heads=H, num_layers_exposed=N_EXPOSED)
    emb = jax.block_until_ready(emb)
    for d in exposed['intermediate']:
        jax.block_until_ready(d['cls'])
        jax.block_until_ready(d['avg'])

    # Correctness check vs. plain-JAX f32 reference.  Tolerance is relaxed slightly
    # because kernel matmuls use bf16 inputs (f32 accumulation) for MXU throughput.
    ref_emb, ref_inter = _ref_encoder(text, params, H, N_EXPOSED)
    np.testing.assert_allclose(np.asarray(emb), np.asarray(ref_emb), rtol=5e-2, atol=5e-2)
    for got, (rc, ra) in zip(exposed['intermediate'], ref_inter):
        np.testing.assert_allclose(np.asarray(got['cls']), np.asarray(rc), rtol=5e-2, atol=5e-2)
        np.testing.assert_allclose(np.asarray(got['avg']), np.asarray(ra), rtol=5e-2, atol=5e-2)

    print("KERNEL_OK")
</pallas_src>

<mosaic_0001>
module attributes {stable_mosaic.version = 11 : i64} {
  func.func @_block_kernel(%arg0: i32, %arg1: memref<2xi32, #tpu.memory_space<smem>>, %arg2: memref<1x8x32xf32, #tpu.memory_space<vmem>>, %arg3: memref<1x32xf32, #tpu.memory_space<vmem>>, %arg4: memref<1x32xf32, #tpu.memory_space<vmem>>, %arg5: memref<32x96xbf16, #tpu.memory_space<vmem>>, %arg6: memref<1x96xf32, #tpu.memory_space<vmem>>, %arg7: memref<32x32xbf16, #tpu.memory_space<vmem>>, %arg8: memref<1x32xf32, #tpu.memory_space<vmem>>, %arg9: memref<1x32xf32, #tpu.memory_space<vmem>>, %arg10: memref<1x32xf32, #tpu.memory_space<vmem>>, %arg11: memref<32x128xbf16, #tpu.memory_space<vmem>>, %arg12: memref<1x128xf32, #tpu.memory_space<vmem>>, %arg13: memref<128x32xbf16, #tpu.memory_space<vmem>>, %arg14: memref<1x32xf32, #tpu.memory_space<vmem>>, %arg15: memref<1x8x32xf32, #tpu.memory_space<vmem>>, %arg16: memref<1x1x32xf32, #tpu.memory_space<vmem>>, %arg17: memref<1x1x32xf32, #tpu.memory_space<vmem>>) attributes {dimension_semantics = [#tpu.dimension_semantics<parallel>], iteration_bounds = array<i64: 2>, scalar_prefetch = 1 : i64, scratch_operands = 0 : i64, tpu.core_type = #tpu.core_type<tc>, window_params = [{transform_indices = @transform_0, window_bounds = array<i64: 1, 8, 32>}, {pipeline_mode = #tpu.pipeline_mode<synchronous>, transform_indices = @transform_1, window_bounds = array<i64: 1, 32>}, {pipeline_mode = #tpu.pipeline_mode<synchronous>, transform_indices = @transform_2, window_bounds = array<i64: 1, 32>}, {pipeline_mode = #tpu.pipeline_mode<synchronous>, transform_indices = @transform_3, window_bounds = array<i64: 32, 96>}, {pipeline_mode = #tpu.pipeline_mode<synchronous>, transform_indices = @transform_4, window_bounds = array<i64: 1, 96>}, {pipeline_mode = #tpu.pipeline_mode<synchronous>, transform_indices = @transform_5, window_bounds = array<i64: 32, 32>}, {pipeline_mode = #tpu.pipeline_mode<synchronous>, transform_indices = @transform_6, window_bounds = array<i64: 1, 32>}, {pipeline_mode = #tpu.pipeline_mode<synchronous>, transform_indices = @transform_7, window_bounds = array<i64: 1, 32>}, {pipeline_mode = #tpu.pipeline_mode<synchronous>, transform_indices = @transform_8, window_bounds = array<i64: 1, 32>}, {pipeline_mode = #tpu.pipeline_mode<synchronous>, transform_indices = @transform_9, window_bounds = array<i64: 32, 128>}, {pipeline_mode = #tpu.pipeline_mode<synchronous>, transform_indices = @transform_10, window_bounds = array<i64: 1, 128>}, {pipeline_mode = #tpu.pipeline_mode<synchronous>, transform_indices = @transform_11, window_bounds = array<i64: 128, 32>}, {pipeline_mode = #tpu.pipeline_mode<synchronous>, transform_indices = @transform_12, window_bounds = array<i64: 1, 32>}, {transform_indices = @transform_13, window_bounds = array<i64: 1, 8, 32>}, {transform_indices = @transform_14, window_bounds = array<i64: 1, 1, 32>}, {transform_indices = @transform_15, window_bounds = array<i64: 1, 1, 32>}]} {
    %c0 = arith.constant 0 : index
    %c0_0 = arith.constant 0 : index
    %c0_1 = arith.constant 0 : index
    %0 = vector.load %arg2[%c0, %c0_0, %c0_1] : memref<1x8x32xf32, #tpu.memory_space<vmem>>, vector<1x8x32xf32>
    %1 = vector.shape_cast %0 : vector<1x8x32xf32> to vector<8x32xf32>
    %cst = arith.constant dense<0.000000e+00> : vector<8xf32>
    %2 = vector.multi_reduction <add>, %1, %cst [1] : vector<8x32xf32> to vector<8xf32>
    %3 = vector.shape_cast %2 : vector<8xf32> to vector<8x1xf32>
    %cst_2 = arith.constant 3.200000e+01 : f32
    %4 = vector.broadcast %cst_2 : f32 to vector<8x1xf32>
    %5 = arith.divf %3, %4 : vector<8x1xf32>
    %6 = vector.broadcast %5 : vector<8x1xf32> to vector<8x32xf32>
    %7 = arith.subf %1, %6 : vector<8x32xf32>
    %8 = arith.mulf %7, %7 : vector<8x32xf32>
    %cst_3 = arith.constant dense<0.000000e+00> : vector<8xf32>
    %9 = vector.multi_reduction <add>, %8, %cst_3 [1] : vector<8x32xf32> to vector<8xf32>
    %10 = vector.shape_cast %9 : vector<8xf32> to vector<8x1xf32>
    %cst_4 = arith.constant 3.200000e+01 : f32
    %11 = vector.broadcast %cst_4 : f32 to vector<8x1xf32>
    %12 = arith.divf %10, %11 : vector<8x1xf32>
    %13 = vector.broadcast %5 : vector<8x1xf32> to vector<8x32xf32>
    %14 = arith.subf %1, %13 : vector<8x32xf32>
    %cst_5 = arith.constant 9.99999974E-6 : f32
    %15 = vector.broadcast %cst_5 : f32 to vector<8x1xf32>
    %16 = arith.addf %12, %15 : vector<8x1xf32>
    %17 = math.rsqrt %16 : vector<8x1xf32>
    %18 = vector.broadcast %17 : vector<8x1xf32> to vector<8x32xf32>
    %19 = arith.mulf %14, %18 : vector<8x32xf32>
    %c0_6 = arith.constant 0 : index
    %c0_7 = arith.constant 0 : index
    %20 = vector.load %arg3[%c0_6, %c0_7] : memref<1x32xf32, #tpu.memory_space<vmem>>, vector<1x32xf32>
    %21 = vector.shape_cast %20 : vector<1x32xf32> to vector<32xf32>
    %22 = vector.shape_cast %21 : vector<32xf32> to vector<1x32xf32>
    %23 = vector.broadcast %22 : vector<1x32xf32> to vector<8x32xf32>
    %24 = arith.mulf %19, %23 : vector<8x32xf32>
    %c0_8 = arith.constant 0 : index
    %c0_9 = arith.constant 0 : index
    %25 = vector.load %arg4[%c0_8, %c0_9] : memref<1x32xf32, #tpu.memory_space<vmem>>, vector<1x32xf32>
    %26 = vector.shape_cast %25 : vector<1x32xf32> to vector<32xf32>
    %27 = vector.shape_cast %26 : vector<32xf32> to vector<1x32xf32>
    %28 = vector.broadcast %27 : vector<1x32xf32> to vector<8x32xf32>
    %29 = arith.addf %24, %28 : vector<8x32xf32>
    %30 = arith.truncf %29 : vector<8x32xf32> to vector<8x32xbf16>
    %c0_10 = arith.constant 0 : index
    %c0_11 = arith.constant 0 : index
    %31 = vector.load %arg5[%c0_10, %c0_11] : memref<32x96xbf16, #tpu.memory_space<vmem>>, vector<32x96xbf16>
    %cst_12 = arith.constant dense<0.000000e+00> : vector<8x96xf32>
    %32 = tpu.matmul %30, %31, %cst_12 {dimension_numbers = #tpu.dot_dimension_numbers<[1], [0], [0], [1], [0, 0, 1, 1], [], []>} : vector<8x32xbf16>, vector<32x96xbf16>, vector<8x96xf32> -> vector<8x96xf32>
    %c0_13 = arith.constant 0 : index
    %c0_14 = arith.constant 0 : index
    %33 = vector.load %arg6[%c0_13, %c0_14] : memref<1x96xf32, #tpu.memory_space<vmem>>, vector<1x96xf32>
    %34 = vector.shape_cast %33 : vector<1x96xf32> to vector<96xf32>
    %35 = vector.shape_cast %34 : vector<96xf32> to vector<1x96xf32>
    %36 = vector.broadcast %35 : vector<1x96xf32> to vector<8x96xf32>
    %37 = arith.addf %32, %36 : vector<8x96xf32>
    %38 = vector.extract_strided_slice %37 {offsets = [0, 0], sizes = [8, 32], strides = [1, 1]} : vector<8x96xf32> to vector<8x32xf32>
    %cst_15 = arith.constant 0.353553385 : f32
    %39 = vector.broadcast %cst_15 : f32 to vector<8x32xf32>
    %40 = arith.mulf %38, %39 : vector<8x32xf32>
    %41 = vector.extract_strided_slice %37 {offsets = [0, 32], sizes = [8, 32], strides = [1, 1]} : vector<8x96xf32> to vector<8x32xf32>
    %42 = vector.extract_strided_slice %37 {offsets = [0, 64], sizes = [8, 32], strides = [1, 1]} : vector<8x96xf32> to vector<8x32xf32>
    %43 = tpu.iota {dimensions = array<i32: 0>} : vector<8x8xi32>
    %44 = tpu.iota {dimensions = array<i32: 1>} : vector<8x8xi32>
    %45 = arith.cmpi sle, %44, %43 : vector<8x8xi32>
    %cst_16 = arith.constant 0.000000e+00 : f32
    %cst_17 = arith.constant -1.000000e+09 : f32
    %46 = vector.broadcast %cst_16 : f32 to vector<8x8xf32>
    %47 = vector.broadcast %cst_17 : f32 to vector<8x8xf32>
    %48 = arith.select %45, %46, %47 : vector<8x8xi1>, vector<8x8xf32>
    %cst_18 = arith.constant 0.000000e+00 : f32
    %49 = vector.broadcast %cst_18 : f32 to vector<8x32xf32>
    %50 = vector.extract_strided_slice %40 {offsets = [0, 0], sizes = [8, 8], strides = [1, 1]} : vector<8x32xf32> to vector<8x8xf32>
    %51 = arith.truncf %50 : vector<8x8xf32> to vector<8x8xbf16>
    %52 = vector.extract_strided_slice %41 {offsets = [0, 0], sizes = [8, 8], strides = [1, 1]} : vector<8x32xf32> to vector<8x8xf32>
    %53 = arith.truncf %52 : vector<8x8xf32> to vector<8x8xbf16>
    %54 = vector.extract_strided_slice %42 {offsets = [0, 0], sizes = [8, 8], strides = [1, 1]} : vector<8x32xf32> to vector<8x8xf32>
    %55 = arith.truncf %54 : vector<8x8xf32> to vector<8x8xbf16>
    %cst_19 = arith.constant dense<0.000000e+00> : vector<8x8xf32>
    %56 = tpu.matmul %51, %53, %cst_19 {dimension_numbers = #tpu.dot_dimension_numbers<[1], [1], [0], [0], [0, 0, 1, 0], [], []>} : vector<8x8xbf16>, vector<8x8xbf16>, vector<8x8xf32> -> vector<8x8xf32>
    %57 = arith.addf %56, %48 : vector<8x8xf32>
    %cst_20 = arith.constant dense<0xFF800000> : vector<8xf32>
    %58 = vector.multi_reduction <maximumf>, %57, %cst_20 [1] : vector<8x8xf32> to vector<8xf32>
    %59 = vector.shape_cast %58 : vector<8xf32> to vector<8x1xf32>
    %60 = vector.broadcast %59 : vector<8x1xf32> to vector<8x8xf32>
    %61 = arith.subf %57, %60 : vector<8x8xf32>
    %62 = math.exp %61 : vector<8x8xf32>
    %cst_21 = arith.constant dense<0.000000e+00> : vector<8xf32>
    %63 = vector.multi_reduction <add>, %62, %cst_21 [1] : vector<8x8xf32> to vector<8xf32>
    %64 = vector.shape_cast %63 : vector<8xf32> to vector<8x1xf32>
    %65 = tpu.reciprocal %64 {approx = true} : vector<8x1xf32> -> vector<8x1xf32>
    %66 = vector.broadcast %65 : vector<8x1xf32> to vector<8x8xf32>
    %67 = arith.mulf %62, %66 : vector<8x8xf32>
    %68 = arith.truncf %67 : vector<8x8xf32> to vector<8x8xbf16>
    %cst_22 = arith.constant dense<0.000000e+00> : vector<8x8xf32>
    %69 = tpu.matmul %68, %55, %cst_22 {dimension_numbers = #tpu.dot_dimension_numbers<[1], [0], [0], [1], [0, 0, 1, 1], [], []>} : vector<8x8xbf16>, vector<8x8xbf16>, vector<8x8xf32> -> vector<8x8xf32>
    %70 = arith.truncf %69 : vector<8x8xf32> to vector<8x8xbf16>
    %c0_23 = arith.constant 0 : index
    %c0_24 = arith.constant 0 : index
    %71 = vector.load %arg7[%c0_23, %c0_24] : memref<32x32xbf16, #tpu.memory_space<vmem>>, vector<8x32xbf16>
    %cst_25 = arith.constant dense<0.000000e+00> : vector<8x32xf32>
    %72 = tpu.matmul %70, %71, %cst_25 {dimension_numbers = #tpu.dot_dimension_numbers<[1], [0], [0], [1], [0, 0, 1, 1], [], []>} : vector<8x8xbf16>, vector<8x32xbf16>, vector<8x32xf32> -> vector<8x32xf32>
    %73 = arith.addf %49, %72 : vector<8x32xf32>
    %74 = vector.extract_strided_slice %40 {offsets = [0, 8], sizes = [8, 8], strides = [1, 1]} : vector<8x32xf32> to vector<8x8xf32>
    %75 = arith.truncf %74 : vector<8x8xf32> to vector<8x8xbf16>
    %76 = vector.extract_strided_slice %41 {offsets = [0, 8], sizes = [8, 8], strides = [1, 1]} : vector<8x32xf32> to vector<8x8xf32>
    %77 = arith.truncf %76 : vector<8x8xf32> to vector<8x8xbf16>
    %78 = vector.extract_strided_slice %42 {offsets = [0, 8], sizes = [8, 8], strides = [1, 1]} : vector<8x32xf32> to vector<8x8xf32>
    %79 = arith.truncf %78 : vector<8x8xf32> to vector<8x8xbf16>
    %cst_26 = arith.constant dense<0.000000e+00> : vector<8x8xf32>
    %80 = tpu.matmul %75, %77, %cst_26 {dimension_numbers = #tpu.dot_dimension_numbers<[1], [1], [0], [0], [0, 0, 1, 0], [], []>} : vector<8x8xbf16>, vector<8x8xbf16>, vector<8x8xf32> -> vector<8x8xf32>
    %81 = arith.addf %80, %48 : vector<8x8xf32>
    %cst_27 = arith.constant dense<0xFF800000> : vector<8xf32>
    %82 = vector.multi_reduction <maximumf>, %81, %cst_27 [1] : vector<8x8xf32> to vector<8xf32>
    %83 = vector.shape_cast %82 : vector<8xf32> to vector<8x1xf32>
    %84 = vector.broadcast %83 : vector<8x1xf32> to vector<8x8xf32>
    %85 = arith.subf %81, %84 : vector<8x8xf32>
    %86 = math.exp %85 : vector<8x8xf32>
    %cst_28 = arith.constant dense<0.000000e+00> : vector<8xf32>
    %87 = vector.multi_reduction <add>, %86, %cst_28 [1] : vector<8x8xf32> to vector<8xf32>
    %88 = vector.shape_cast %87 : vector<8xf32> to vector<8x1xf32>
    %89 = tpu.reciprocal %88 {approx = true} : vector<8x1xf32> -> vector<8x1xf32>
    %90 = vector.broadcast %89 : vector<8x1xf32> to vector<8x8xf32>
    %91 = arith.mulf %86, %90 : vector<8x8xf32>
    %92 = arith.truncf %91 : vector<8x8xf32> to vector<8x8xbf16>
    %cst_29 = arith.constant dense<0.000000e+00> : vector<8x8xf32>
    %93 = tpu.matmul %92, %79, %cst_29 {dimension_numbers = #tpu.dot_dimension_numbers<[1], [0], [0], [1], [0, 0, 1, 1], [], []>} : vector<8x8xbf16>, vector<8x8xbf16>, vector<8x8xf32> -> vector<8x8xf32>
    %94 = arith.truncf %93 : vector<8x8xf32> to vector<8x8xbf16>
    %c8 = arith.constant 8 : index
    %c0_30 = arith.constant 0 : index
    %95 = vector.load %arg7[%c8, %c0_30] : memref<32x32xbf16, #tpu.memory_space<vmem>>, vector<8x32xbf16>
    %cst_31 = arith.constant dense<0.000000e+00> : vector<8x32xf32>
    %96 = tpu.matmul %94, %95, %cst_31 {dimension_numbers = #tpu.dot_dimension_numbers<[1], [0], [0], [1], [0, 0, 1, 1], [], []>} : vector<8x8xbf16>, vector<8x32xbf16>, vector<8x32xf32> -> vector<8x32xf32>
    %97 = arith.addf %73, %96 : vector<8x32xf32>
    %98 = vector.extract_strided_slice %40 {offsets = [0, 16], sizes = [8, 8], strides = [1, 1]} : vector<8x32xf32> to vector<8x8xf32>
    %99 = arith.truncf %98 : vector<8x8xf32> to vector<8x8xbf16>
    %100 = vector.extract_strided_slice %41 {offsets = [0, 16], sizes = [8, 8], strides = [1, 1]} : vector<8x32xf32> to vector<8x8xf32>
    %101 = arith.truncf %100 : vector<8x8xf32> to vector<8x8xbf16>
    %102 = vector.extract_strided_slice %42 {offsets = [0, 16], sizes = [8, 8], strides = [1, 1]} : vector<8x32xf32> to vector<8x8xf32>
    %103 = arith.truncf %102 : vector<8x8xf32> to vector<8x8xbf16>
    %cst_32 = arith.constant dense<0.000000e+00> : vector<8x8xf32>
    %104 = tpu.matmul %99, %101, %cst_32 {dimension_numbers = #tpu.dot_dimension_numbers<[1], [1], [0], [0], [0, 0, 1, 0], [], []>} : vector<8x8xbf16>, vector<8x8xbf16>, vector<8x8xf32> -> vector<8x8xf32>
    %105 = arith.addf %104, %48 : vector<8x8xf32>
    %cst_33 = arith.constant dense<0xFF800000> : vector<8xf32>
    %106 = vector.multi_reduction <maximumf>, %105, %cst_33 [1] : vector<8x8xf32> to vector<8xf32>
    %107 = vector.shape_cast %106 : vector<8xf32> to vector<8x1xf32>
    %108 = vector.broadcast %107 : vector<8x1xf32> to vector<8x8xf32>
    %109 = arith.subf %105, %108 : vector<8x8xf32>
    %110 = math.exp %109 : vector<8x8xf32>
    %cst_34 = arith.constant dense<0.000000e+00> : vector<8xf32>
    %111 = vector.multi_reduction <add>, %110, %cst_34 [1] : vector<8x8xf32> to vector<8xf32>
    %112 = vector.shape_cast %111 : vector<8xf32> to vector<8x1xf32>
    %113 = tpu.reciprocal %112 {approx = true} : vector<8x1xf32> -> vector<8x1xf32>
    %114 = vector.broadcast %113 : vector<8x1xf32> to vector<8x8xf32>
    %115 = arith.mulf %110, %114 : vector<8x8xf32>
    %116 = arith.truncf %115 : vector<8x8xf32> to vector<8x8xbf16>
    %cst_35 = arith.constant dense<0.000000e+00> : vector<8x8xf32>
    %117 = tpu.matmul %116, %103, %cst_35 {dimension_numbers = #tpu.dot_dimension_numbers<[1], [0], [0], [1], [0, 0, 1, 1], [], []>} : vector<8x8xbf16>, vector<8x8xbf16>, vector<8x8xf32> -> vector<8x8xf32>
    %118 = arith.truncf %117 : vector<8x8xf32> to vector<8x8xbf16>
    %c16 = arith.constant 16 : index
    %c0_36 = arith.constant 0 : index
    %119 = vector.load %arg7[%c16, %c0_36] : memref<32x32xbf16, #tpu.memory_space<vmem>>, vector<8x32xbf16>
    %cst_37 = arith.constant dense<0.000000e+00> : vector<8x32xf32>
    %120 = tpu.matmul %118, %119, %cst_37 {dimension_numbers = #tpu.dot_dimension_numbers<[1], [0], [0], [1], [0, 0, 1, 1], [], []>} : vector<8x8xbf16>, vector<8x32xbf16>, vector<8x32xf32> -> vector<8x32xf32>
    %121 = arith.addf %97, %120 : vector<8x32xf32>
    %122 = vector.extract_strided_slice %40 {offsets = [0, 24], sizes = [8, 8], strides = [1, 1]} : vector<8x32xf32> to vector<8x8xf32>
    %123 = arith.truncf %122 : vector<8x8xf32> to vector<8x8xbf16>
    %124 = vector.extract_strided_slice %41 {offsets = [0, 24], sizes = [8, 8], strides = [1, 1]} : vector<8x32xf32> to vector<8x8xf32>
    %125 = arith.truncf %124 : vector<8x8xf32> to vector<8x8xbf16>
    %126 = vector.extract_strided_slice %42 {offsets = [0, 24], sizes = [8, 8], strides = [1, 1]} : vector<8x32xf32> to vector<8x8xf32>
    %127 = arith.truncf %126 : vector<8x8xf32> to vector<8x8xbf16>
    %cst_38 = arith.constant dense<0.000000e+00> : vector<8x8xf32>
    %128 = tpu.matmul %123, %125, %cst_38 {dimension_numbers = #tpu.dot_dimension_numbers<[1], [1], [0], [0], [0, 0, 1, 0], [], []>} : vector<8x8xbf16>, vector<8x8xbf16>, vector<8x8xf32> -> vector<8x8xf32>
    %129 = arith.addf %128, %48 : vector<8x8xf32>
    %cst_39 = arith.constant dense<0xFF800000> : vector<8xf32>
    %130 = vector.multi_reduction <maximumf>, %129, %cst_39 [1] : vector<8x8xf32> to vector<8xf32>
    %131 = vector.shape_cast %130 : vector<8xf32> to vector<8x1xf32>
    %132 = vector.broadcast %131 : vector<8x1xf32> to vector<8x8xf32>
    %133 = arith.subf %129, %132 : vector<8x8xf32>
    %134 = math.exp %133 : vector<8x8xf32>
    %cst_40 = arith.constant dense<0.000000e+00> : vector<8xf32>
    %135 = vector.multi_reduction <add>, %134, %cst_40 [1] : vector<8x8xf32> to vector<8xf32>
    %136 = vector.shape_cast %135 : vector<8xf32> to vector<8x1xf32>
    %137 = tpu.reciprocal %136 {approx = true} : vector<8x1xf32> -> vector<8x1xf32>
    %138 = vector.broadcast %137 : vector<8x1xf32> to vector<8x8xf32>
    %139 = arith.mulf %134, %138 : vector<8x8xf32>
    %140 = arith.truncf %139 : vector<8x8xf32> to vector<8x8xbf16>
    %cst_41 = arith.constant dense<0.000000e+00> : vector<8x8xf32>
    %141 = tpu.matmul %140, %127, %cst_41 {dimension_numbers = #tpu.dot_dimension_numbers<[1], [0], [0], [1], [0, 0, 1, 1], [], []>} : vector<8x8xbf16>, vector<8x8xbf16>, vector<8x8xf32> -> vector<8x8xf32>
    %142 = arith.truncf %141 : vector<8x8xf32> to vector<8x8xbf16>
    %c24 = arith.constant 24 : index
    %c0_42 = arith.constant 0 : index
    %143 = vector.load %arg7[%c24, %c0_42] : memref<32x32xbf16, #tpu.memory_space<vmem>>, vector<8x32xbf16>
    %cst_43 = arith.constant dense<0.000000e+00> : vector<8x32xf32>
    %144 = tpu.matmul %142, %143, %cst_43 {dimension_numbers = #tpu.dot_dimension_numbers<[1], [0], [0], [1], [0, 0, 1, 1], [], []>} : vector<8x8xbf16>, vector<8x32xbf16>, vector<8x32xf32> -> vector<8x32xf32>
    %145 = arith.addf %121, %144 : vector<8x32xf32>
    %146 = arith.addf %1, %145 : vector<8x32xf32>
    %c0_44 = arith.constant 0 : index
    %c0_45 = arith.constant 0 : index
    %147 = vector.load %arg8[%c0_44, %c0_45] : memref<1x32xf32, #tpu.memory_space<vmem>>, vector<1x32xf32>
    %148 = vector.shape_cast %147 : vector<1x32xf32> to vector<32xf32>
    %149 = vector.shape_cast %148 : vector<32xf32> to vector<1x32xf32>
    %150 = vector.broadcast %149 : vector<1x32xf32> to vector<8x32xf32>
    %151 = arith.addf %146, %150 : vector<8x32xf32>
    %cst_46 = arith.constant dense<0.000000e+00> : vector<8xf32>
    %152 = vector.multi_reduction <add>, %151, %cst_46 [1] : vector<8x32xf32> to vector<8xf32>
    %153 = vector.shape_cast %152 : vector<8xf32> to vector<8x1xf32>
    %cst_47 = arith.constant 3.200000e+01 : f32
    %154 = vector.broadcast %cst_47 : f32 to vector<8x1xf32>
    %155 = arith.divf %153, %154 : vector<8x1xf32>
    %156 = vector.broadcast %155 : vector<8x1xf32> to vector<8x32xf32>
    %157 = arith.subf %151, %156 : vector<8x32xf32>
    %158 = arith.mulf %157, %157 : vector<8x32xf32>
    %cst_48 = arith.constant dense<0.000000e+00> : vector<8xf32>
    %159 = vector.multi_reduction <add>, %158, %cst_48 [1] : vector<8x32xf32> to vector<8xf32>
    %160 = vector.shape_cast %159 : vector<8xf32> to vector<8x1xf32>
    %cst_49 = arith.constant 3.200000e+01 : f32
    %161 = vector.broadcast %cst_49 : f32 to vector<8x1xf32>
    %162 = arith.divf %160, %161 : vector<8x1xf32>
    %163 = vector.broadcast %155 : vector<8x1xf32> to vector<8x32xf32>
    %164 = arith.subf %151, %163 : vector<8x32xf32>
    %cst_50 = arith.constant 9.99999974E-6 : f32
    %165 = vector.broadcast %cst_50 : f32 to vector<8x1xf32>
    %166 = arith.addf %162, %165 : vector<8x1xf32>
    %167 = math.rsqrt %166 : vector<8x1xf32>
    %168 = vector.broadcast %167 : vector<8x1xf32> to vector<8x32xf32>
    %169 = arith.mulf %164, %168 : vector<8x32xf32>
    %c0_51 = arith.constant 0 : index
    %c0_52 = arith.constant 0 : index
    %170 = vector.load %arg9[%c0_51, %c0_52] : memref<1x32xf32, #tpu.memory_space<vmem>>, vector<1x32xf32>
    %171 = vector.shape_cast %170 : vector<1x32xf32> to vector<32xf32>
    %172 = vector.shape_cast %171 : vector<32xf32> to vector<1x32xf32>
    %173 = vector.broadcast %172 : vector<1x32xf32> to vector<8x32xf32>
    %174 = arith.mulf %169, %173 : vector<8x32xf32>
    %c0_53 = arith.constant 0 : index
    %c0_54 = arith.constant 0 : index
    %175 = vector.load %arg10[%c0_53, %c0_54] : memref<1x32xf32, #tpu.memory_space<vmem>>, vector<1x32xf32>
    %176 = vector.shape_cast %175 : vector<1x32xf32> to vector<32xf32>
    %177 = vector.shape_cast %176 : vector<32xf32> to vector<1x32xf32>
    %178 = vector.broadcast %177 : vector<1x32xf32> to vector<8x32xf32>
    %179 = arith.addf %174, %178 : vector<8x32xf32>
    %180 = arith.truncf %179 : vector<8x32xf32> to vector<8x32xbf16>
    %c0_55 = arith.constant 0 : index
    %c0_56 = arith.constant 0 : index
    %181 = vector.load %arg11[%c0_55, %c0_56] : memref<32x128xbf16, #tpu.memory_space<vmem>>, vector<32x128xbf16>
    %cst_57 = arith.constant dense<0.000000e+00> : vector<8x128xf32>
    %182 = tpu.matmul %180, %181, %cst_57 {dimension_numbers = #tpu.dot_dimension_numbers<[1], [0], [0], [1], [0, 0, 1, 1], [], []>} : vector<8x32xbf16>, vector<32x128xbf16>, vector<8x128xf32> -> vector<8x128xf32>
    %c0_58 = arith.constant 0 : index
    %c0_59 = arith.constant 0 : index
    %183 = vector.load %arg12[%c0_58, %c0_59] : memref<1x128xf32, #tpu.memory_space<vmem>>, vector<1x128xf32>
    %184 = vector.shape_cast %183 : vector<1x128xf32> to vector<128xf32>
    %185 = vector.shape_cast %184 : vector<128xf32> to vector<1x128xf32>
    %186 = vector.broadcast %185 : vector<1x128xf32> to vector<8x128xf32>
    %187 = arith.addf %182, %186 : vector<8x128xf32>
    %cst_60 = arith.constant 1.702000e+00 : f32
    %188 = vector.broadcast %cst_60 : f32 to vector<8x128xf32>
    %189 = arith.mulf %188, %187 : vector<8x128xf32>
    %190 = arith.negf %189 : vector<8x128xf32>
    %191 = math.exp %190 : vector<8x128xf32>
    %cst_61 = arith.constant 1.000000e+00 : f32
    %192 = vector.broadcast %cst_61 : f32 to vector<8x128xf32>
    %193 = arith.addf %192, %191 : vector<8x128xf32>
    %194 = arith.divf %192, %193 : vector<8x128xf32>
    %195 = arith.mulf %187, %194 : vector<8x128xf32>
    %196 = arith.truncf %195 : vector<8x128xf32> to vector<8x128xbf16>
    %c0_62 = arith.constant 0 : index
    %c0_63 = arith.constant 0 : index
    %197 = vector.load %arg13[%c0_62, %c0_63] : memref<128x32xbf16, #tpu.memory_space<vmem>>, vector<128x32xbf16>
    %cst_64 = arith.constant dense<0.000000e+00> : vector<8x32xf32>
    %198 = tpu.matmul %196, %197, %cst_64 {dimension_numbers = #tpu.dot_dimension_numbers<[1], [0], [0], [1], [0, 0, 1, 1], [], []>} : vector<8x128xbf16>, vector<128x32xbf16>, vector<8x32xf32> -> vector<8x32xf32>
    %c0_65 = arith.constant 0 : index
    %c0_66 = arith.constant 0 : index
    %199 = vector.load %arg14[%c0_65, %c0_66] : memref<1x32xf32, #tpu.memory_space<vmem>>, vector<1x32xf32>
    %200 = vector.shape_cast %199 : vector<1x32xf32> to vector<32xf32>
    %201 = vector.shape_cast %200 : vector<32xf32> to vector<1x32xf32>
    %202 = vector.broadcast %201 : vector<1x32xf32> to vector<8x32xf32>
    %203 = arith.addf %198, %202 : vector<8x32xf32>
    %204 = arith.addf %151, %203 : vector<8x32xf32>
    %c0_67 = arith.constant 0 : index
    %c0_68 = arith.constant 0 : index
    %c0_69 = arith.constant 0 : index
    %205 = vector.load %arg15[%c0_67, %c0_68, %c0_69] : memref<1x8x32xf32, #tpu.memory_space<vmem>>, vector<1x8x32xf32>
    %206 = vector.shape_cast %205 : vector<1x8x32xf32> to vector<8x32xf32>
    %207 = vector.shape_cast %204 : vector<8x32xf32> to vector<1x8x32xf32>
    tpu.vector_store %arg15[%c0_67, %c0_68, %c0_69], %207 {strides = array<i32>} : memref<1x8x32xf32, #tpu.memory_space<vmem>>, vector<1x8x32xf32>,
    %208 = arith.index_cast %arg0 : i32 to index
    %209 = memref.load %arg1[%208] : memref<2xi32, #tpu.memory_space<smem>>
    %c0_70 = arith.constant 0 : index
    %210 = arith.index_cast %209 : i32 to index
    %c0_71 = arith.constant 0 : index
    %211 = vector.load %arg15[%c0_70, %210, %c0_71] : memref<1x8x32xf32, #tpu.memory_space<vmem>>, vector<1x1x32xf32>
    %212 = vector.shape_cast %211 : vector<1x1x32xf32> to vector<1x32xf32>
    %cst_72 = arith.constant dense<0.000000e+00> : vector<32xf32>
    %213 = vector.multi_reduction <add>, %204, %cst_72 [0] : vector<8x32xf32> to vector<32xf32>
    %214 = vector.shape_cast %213 : vector<32xf32> to vector<1x32xf32>
    %c0_73 = arith.constant 0 : index
    %c0_74 = arith.constant 0 : index
    %c0_75 = arith.constant 0 : index
    %215 = vector.load %arg16[%c0_73, %c0_74, %c0_75] : memref<1x1x32xf32, #tpu.memory_space<vmem>>, vector<1x1x32xf32>
    %216 = vector.shape_cast %215 : vector<1x1x32xf32> to vector<1x32xf32>
    %217 = vector.shape_cast %212 : vector<1x32xf32> to vector<1x1x32xf32>
    tpu.vector_store %arg16[%c0_73, %c0_74, %c0_75], %217 {strides = array<i32>} : memref<1x1x32xf32, #tpu.memory_space<vmem>>, vector<1x1x32xf32>,
    %218 = arith.subf %214, %212 : vector<1x32xf32>
    %cst_76 = arith.constant 7.000000e+00 : f32
    %219 = vector.broadcast %cst_76 : f32 to vector<1x32xf32>
    %220 = arith.divf %218, %219 : vector<1x32xf32>
    %c0_77 = arith.constant 0 : index
    %c0_78 = arith.constant 0 : index
    %c0_79 = arith.constant 0 : index
    %221 = vector.load %arg17[%c0_77, %c0_78, %c0_79] : memref<1x1x32xf32, #tpu.memory_space<vmem>>, vector<1x1x32xf32>
    %222 = vector.shape_cast %221 : vector<1x1x32xf32> to vector<1x32xf32>
    %223 = vector.shape_cast %220 : vector<1x32xf32> to vector<1x1x32xf32>
    tpu.vector_store %arg17[%c0_77, %c0_78, %c0_79], %223 {strides = array<i32>} : memref<1x1x32xf32, #tpu.memory_space<vmem>>, vector<1x1x32xf32>,
    return
  }
  func.func @transform_0(%arg0: i32, %arg1: memref<2xi32, #tpu.memory_space<smem>>) -> (i32, i32, i32) {
    %c0_i32 = arith.constant 0 : i32
    %c0_i32_0 = arith.constant 0 : i32
    %c0_i32_1 = arith.constant 0 : i32
    return %arg0, %c0_i32, %c0_i32_0 : i32, i32, i32
  }
  func.func @transform_1(%arg0: i32, %arg1: memref<2xi32, #tpu.memory_space<smem>>) -> (i32, i32) {
    %c0_i32 = arith.constant 0 : i32
    %c0_i32_0 = arith.constant 0 : i32
    %c0_i32_1 = arith.constant 0 : i32
    return %c0_i32, %c0_i32_0 : i32, i32
  }
  func.func @transform_2(%arg0: i32, %arg1: memref<2xi32, #tpu.memory_space<smem>>) -> (i32, i32) {
    %c0_i32 = arith.constant 0 : i32
    %c0_i32_0 = arith.constant 0 : i32
    %c0_i32_1 = arith.constant 0 : i32
    return %c0_i32, %c0_i32_0 : i32, i32
  }
  func.func @transform_3(%arg0: i32, %arg1: memref<2xi32, #tpu.memory_space<smem>>) -> (i32, i32) {
    %c0_i32 = arith.constant 0 : i32
    %c0_i32_0 = arith.constant 0 : i32
    %c0_i32_1 = arith.constant 0 : i32
    return %c0_i32, %c0_i32_0 : i32, i32
  }
  func.func @transform_4(%arg0: i32, %arg1: memref<2xi32, #tpu.memory_space<smem>>) -> (i32, i32) {
    %c0_i32 = arith.constant 0 : i32
    %c0_i32_0 = arith.constant 0 : i32
    %c0_i32_1 = arith.constant 0 : i32
    return %c0_i32, %c0_i32_0 : i32, i32
  }
  func.func @transform_5(%arg0: i32, %arg1: memref<2xi32, #tpu.memory_space<smem>>) -> (i32, i32) {
    %c0_i32 = arith.constant 0 : i32
    %c0_i32_0 = arith.constant 0 : i32
    %c0_i32_1 = arith.constant 0 : i32
    return %c0_i32, %c0_i32_0 : i32, i32
  }
  func.func @transform_6(%arg0: i32, %arg1: memref<2xi32, #tpu.memory_space<smem>>) -> (i32, i32) {
    %c0_i32 = arith.constant 0 : i32
    %c0_i32_0 = arith.constant 0 : i32
    %c0_i32_1 = arith.constant 0 : i32
    return %c0_i32, %c0_i32_0 : i32, i32
  }
  func.func @transform_7(%arg0: i32, %arg1: memref<2xi32, #tpu.memory_space<smem>>) -> (i32, i32) {
    %c0_i32 = arith.constant 0 : i32
    %c0_i32_0 = arith.constant 0 : i32
    %c0_i32_1 = arith.constant 0 : i32
    return %c0_i32, %c0_i32_0 : i32, i32
  }
  func.func @transform_8(%arg0: i32, %arg1: memref<2xi32, #tpu.memory_space<smem>>) -> (i32, i32) {
    %c0_i32 = arith.constant 0 : i32
    %c0_i32_0 = arith.constant 0 : i32
    %c0_i32_1 = arith.constant 0 : i32
    return %c0_i32, %c0_i32_0 : i32, i32
  }
  func.func @transform_9(%arg0: i32, %arg1: memref<2xi32, #tpu.memory_space<smem>>) -> (i32, i32) {
    %c0_i32 = arith.constant 0 : i32
    %c0_i32_0 = arith.constant 0 : i32
    %c0_i32_1 = arith.constant 0 : i32
    return %c0_i32, %c0_i32_0 : i32, i32
  }
  func.func @transform_10(%arg0: i32, %arg1: memref<2xi32, #tpu.memory_space<smem>>) -> (i32, i32) {
    %c0_i32 = arith.constant 0 : i32
    %c0_i32_0 = arith.constant 0 : i32
    %c0_i32_1 = arith.constant 0 : i32
    return %c0_i32, %c0_i32_0 : i32, i32
  }
  func.func @transform_11(%arg0: i32, %arg1: memref<2xi32, #tpu.memory_space<smem>>) -> (i32, i32) {
    %c0_i32 = arith.constant 0 : i32
    %c0_i32_0 = arith.constant 0 : i32
    %c0_i32_1 = arith.constant 0 : i32
    return %c0_i32, %c0_i32_0 : i32, i32
  }
  func.func @transform_12(%arg0: i32, %arg1: memref<2xi32, #tpu.memory_space<smem>>) -> (i32, i32) {
    %c0_i32 = arith.constant 0 : i32
    %c0_i32_0 = arith.constant 0 : i32
    %c0_i32_1 = arith.constant 0 : i32
    return %c0_i32, %c0_i32_0 : i32, i32
  }
  func.func @transform_13(%arg0: i32, %arg1: memref<2xi32, #tpu.memory_space<smem>>) -> (i32, i32, i32) {
    %c0_i32 = arith.constant 0 : i32
    %c0_i32_0 = arith.constant 0 : i32
    %c0_i32_1 = arith.constant 0 : i32
    return %arg0, %c0_i32, %c0_i32_0 : i32, i32, i32
  }
  func.func @transform_14(%arg0: i32, %arg1: memref<2xi32, #tpu.memory_space<smem>>) -> (i32, i32, i32) {
    %c0_i32 = arith.constant 0 : i32
    %c0_i32_0 = arith.constant 0 : i32
    %c0_i32_1 = arith.constant 0 : i32
    return %arg0, %c0_i32, %c0_i32_0 : i32, i32, i32
  }
  func.func @transform_15(%arg0: i32, %arg1: memref<2xi32, #tpu.memory_space<smem>>) -> (i32, i32, i32) {
    %c0_i32 = arith.constant 0 : i32
    %c0_i32_0 = arith.constant 0 : i32
    %c0_i32_1 = arith.constant 0 : i32
    return %arg0, %c0_i32, %c0_i32_0 : i32, i32, i32
  }
}

</mosaic_0001>

<llo_original>
// kernel: tpu_custom_call.1
$region0: #{tpu_custom_call.1}
  #allocation0 [shape = 'u32[]', space=smem, size = 0x4, offset = 0x4, fixed_abs, tag = 'smem constant byte address 0x4 - core index']
  #allocation1 [shape = 'u32[144,128]{1,0:T(1,128)}', space=vmem, size = 0x12000, scoped, tag = 'internal scratch']
  #allocation2 [shape = 's32[1]{0}', space=sflag, size = 0x4, scoped, tag = 'scoped memory for tpu_custom_call.1']
  #allocation3 [shape = 'u8[512]{0}', space=smem, size = 0x200, scoped, tag = 'prefetched SMEM operand 0']
  %s0 = inlined_call_operand.vmem [shape: s32[2], index: 0, kind: input, shape index: {}]
  %s1 = inlined_call_operand.vmem [shape: f32[2,8,32], index: 1, kind: input, shape index: {}]
  %s2 = inlined_call_operand.vmem [shape: f32[1,32], index: 2, kind: input, shape index: {}]
  %s3 = inlined_call_operand.vmem [shape: f32[1,32], index: 3, kind: input, shape index: {}]
  %s4 = inlined_call_operand.vmem [shape: bf16[32,96], index: 4, kind: input, shape index: {}]
  %s5 = inlined_call_operand.vmem [shape: f32[1,96], index: 5, kind: input, shape index: {}]
  %s6 = inlined_call_operand.vmem [shape: bf16[32,32], index: 6, kind: input, shape index: {}]
  %s7 = inlined_call_operand.vmem [shape: f32[1,32], index: 7, kind: input, shape index: {}]
  %s8 = inlined_call_operand.vmem [shape: f32[1,32], index: 8, kind: input, shape index: {}]
  %s9 = inlined_call_operand.vmem [shape: f32[1,32], index: 9, kind: input, shape index: {}]
  %s10 = inlined_call_operand.vmem [shape: bf16[32,128], index: 10, kind: input, shape index: {}]
  %s11 = inlined_call_operand.vmem [shape: f32[1,128], index: 11, kind: input, shape index: {}]
  %s12 = inlined_call_operand.vmem [shape: bf16[128,32], index: 12, kind: input, shape index: {}]
  %s13 = inlined_call_operand.vmem [shape: f32[1,32], index: 13, kind: input, shape index: {}]
  %s14 = inlined_call_operand.hbm [shape: f32[2,8,32], index: 14, kind: output, shape index: {0}]
  %s15 = inlined_call_operand.hbm [shape: f32[2,1,32], index: 15, kind: output, shape index: {1}]
  %s16 = inlined_call_operand.hbm [shape: f32[2,1,32], index: 16, kind: output, shape index: {2}]
  %17 = xla_tuple %s14, %s15, %s16
  %s18 = sld [smem:[#allocation0]]
  $region101: #{tpu_custom_call.1} parent=0
    _
  %s20 = ssub.s32 1, %s18
  %s21 = scalar_select 0, %s20, %s18
  %s22 = sshll.u32 %s0, 4
  %s23 = int_to_ptr.vmem [resolvable:$true] %s22
  %25 = dma.vmem_to_smem %s23, 16, [#allocation3], [#allocation2]
  %26 = dma.done [#allocation2], 16
  %27 = sfence
  $region1: #{tpu_custom_call.1} parent=0
    #allocation4 [shape = 'u8[8192]{0}', space=vmem, size = 0x2000, scoped, tag = 'output window, operand 0']
    #allocation5 [shape = 's32[2]{0}', space=sflag, size = 0x8, scoped, tag = 'scoped memory for tpu_custom_call.1']
    #allocation6 [shape = 'u8[1024]{0}', space=vmem, size = 0x400, scoped, tag = 'output window, operand 1']
    #allocation7 [shape = 's32[2]{0}', space=sflag, size = 0x8, scoped, tag = 'scoped memory for tpu_custom_call.1']
    #allocation8 [shape = 'u8[1024]{0}', space=vmem, size = 0x400, scoped, tag = 'output window, operand 2']
    %28 = vsyncpa [#allocation5], 0
    %s29 = scalar_lea.sflag [#allocation5], 1
    %30 = vsyncpa %s29, 0
    %31 = vsyncpa [#allocation7], 0
    %s32 = scalar_lea.sflag [#allocation7], 1
    %33 = vsyncpa %s32, 0
    loop: start=0, step=1, limit=4
    $region2: #{tpu_custom_call.1} parent=1 // loop_pre_header
      _
    $region3: #{tpu_custom_call.1} parent=1 // loop_header
      %s35 = sphi 0, %s39
      %p36 = scmp.ge.s32.totalorder %s35, 4
      %s45 = sphi 0, %s47
      %s48 = sphi 0, %s45
      %s49 = sphi 0, %s48
      %s65 = sphi 0, %s49
      %s69 = sphi 0, %s69
      %s71 = sphi 0, %s69
      %s72 = sphi 0, %s71
      %s86 = sphi 0, %s72
      %s90 = sphi 0, %s90
      %s92 = sphi 0, %s90
      %s93 = sphi 0, %s92
      %s107 = sphi 0, %s93
      %s111 = sphi 0, %s111
      %s113 = sphi 0, %s111
      %s114 = sphi 0, %s113
      %s128 = sphi 0, %s114
      %s132 = sphi 0, %s132
      %s134 = sphi 0, %s132
      %s135 = sphi 0, %s134
      %s149 = sphi 0, %s135
      %s153 = sphi 0, %s153
      %s155 = sphi 0, %s153
      %s156 = sphi 0, %s155
      %s170 = sphi 0, %s156
      %s174 = sphi 0, %s174
      %s176 = sphi 0, %s174
      %s177 = sphi 0, %s176
      %s191 = sphi 0, %s177
      %s195 = sphi 0, %s195
      %s197 = sphi 0, %s195
      %s198 = sphi 0, %s197
      %s212 = sphi 0, %s198
      %s216 = sphi 0, %s216
      %s218 = sphi 0, %s216
      %s219 = sphi 0, %s218
      %s233 = sphi 0, %s219
      %s237 = sphi 0, %s237
      %s239 = sphi 0, %s237
      %s240 = sphi 0, %s239
      %s254 = sphi 0, %s240
      %s258 = sphi 0, %s258
      %s260 = sphi 0, %s258
      %s261 = sphi 0, %s260
      %s275 = sphi 0, %s261
      %s279 = sphi 0, %s279
      %s281 = sphi 0, %s279
      %s282 = sphi 0, %s281
      %s296 = sphi 0, %s282
      %s300 = sphi 0, %s300
      %s302 = sphi 0, %s300
      %s303 = sphi 0, %s302
      %s317 = sphi 0, %s303
      %s323 = sphi 0, %s325
      %s326 = sphi 0, %s323
      %s327 = sphi 0, %s326
      %s343 = sphi 0, %s327
      %s349 = sphi 0, %s351
      %s352 = sphi 0, %s349
      %s353 = sphi 0, %s352
      %s369 = sphi 0, %s353
      %s375 = sphi 0, %s377
      %s378 = sphi 0, %s375
      %s379 = sphi 0, %s378
      %s395 = sphi 0, %s379
    $region4: #{tpu_custom_call.1} parent=1 // loop_header_branch
      %38 = sbr.rel (%p36) target = $region8
    $region5: #{tpu_custom_call.1} parent=1 // loop_body
      %s40 = ssub.s32 %s35, 1
      %s41 = ssub.s32 %s35, 2
      %s42 = sadd.s32 %s35, 1
      %s43 = ssub.s32 %s35, %s42
      %p44 = scmp.eq.s32.totalorder %s43, 0
      %s46 = sadd.s32 %s45, 1
      %s47 = scalar_select %p44, %s45, %s46
      %p50 = pneg %p44
      %p51 = scmp.eq.s32.totalorder %s35, 1
      %p52 = por %p50, %p51
      %p53 = scmp.ne.s32.totalorder %s45, %s48
      %p54 = scmp.eq.s32.totalorder %s35, 0
      %p55 = por %p53, %p54
      %p56 = scmp.ne.s32.totalorder %s45, %s48
      %p57 = scmp.eq.s32.totalorder %s40, 1
      %p58 = por %p56, %p57
      %p59 = scmp.ne.s32.totalorder %s48, %s49
      %p60 = scmp.eq.s32.totalorder %s40, 0
      %p61 = por %p59, %p60
      %p62 = scmp.ne.s32.totalorder %s48, %s49
      %p63 = scmp.eq.s32.totalorder %s41, 1
      %p64 = por %p62, %p63
      %p66 = scmp.ne.s32.totalorder %s49, %s65
      %p67 = scmp.eq.s32.totalorder %s41, 0
      %p68 = por %p66, %p67
      %s70 = sadd.s32 %s69, 1
      %p73 = scmp.eq.s32.totalorder %s35, 1
      %p74 = scmp.ne.s32.totalorder %s69, %s71
      %p75 = scmp.eq.s32.totalorder %s35, 0
      %p76 = por %p74, %p75
      %p77 = scmp.ne.s32.totalorder %s69, %s71
      %p78 = scmp.eq.s32.totalorder %s40, 1
      %p79 = por %p77, %p78
      %p80 = scmp.ne.s32.totalorder %s71, %s72
      %p81 = scmp.eq.s32.totalorder %s40, 0
      %p82 = por %p80, %p81
      %p83 = scmp.ne.s32.totalorder %s71, %s72
      %p84 = scmp.eq.s32.totalorder %s41, 1
      %p85 = por %p83, %p84
      %p87 = scmp.ne.s32.totalorder %s72, %s86
      %p88 = scmp.eq.s32.totalorder %s41, 0
      %p89 = por %p87, %p88
      %s91 = sadd.s32 %s90, 1
      %p94 = scmp.eq.s32.totalorder %s35, 1
      %p95 = scmp.ne.s32.totalorder %s90, %s92
      %p96 = scmp.eq.s32.totalorder %s35, 0
      %p97 = por %p95, %p96
      %p98 = scmp.ne.s32.totalorder %s90, %s92
      %p99 = scmp.eq.s32.totalorder %s40, 1
      %p100 = por %p98, %p99
      %p101 = scmp.ne.s32.totalorder %s92, %s93
      %p102 = scmp.eq.s32.totalorder %s40, 0
      %p103 = por %p101, %p102
      %p104 = scmp.ne.s32.totalorder %s92, %s93
      %p105 = scmp.eq.s32.totalorder %s41, 1
      %p106 = por %p104, %p105
      %p108 = scmp.ne.s32.totalorder %s93, %s107
      %p109 = scmp.eq.s32.totalorder %s41, 0
      %p110 = por %p108, %p109
      %s112 = sadd.s32 %s111, 1
      %p115 = scmp.eq.s32.totalorder %s35, 1
      %p116 = scmp.ne.s32.totalorder %s111, %s113
      %p117 = scmp.eq.s32.totalorder %s35, 0
      %p118 = por %p116, %p117
      %p119 = scmp.ne.s32.totalorder %s111, %s113
      %p120 = scmp.eq.s32.totalorder %s40, 1
      %p121 = por %p119, %p120
      %p122 = scmp.ne.s32.totalorder %s113, %s114
      %p123 = scmp.eq.s32.totalorder %s40, 0
      %p124 = por %p122, %p123
      %p125 = scmp.ne.s32.totalorder %s113, %s114
      %p126 = scmp.eq.s32.totalorder %s41, 1
      %p127 = por %p125, %p126
      %p129 = scmp.ne.s32.totalorder %s114, %s128
      %p130 = scmp.eq.s32.totalorder %s41, 0
      %p131 = por %p129, %p130
      %s133 = sadd.s32 %s132, 1
      %p136 = scmp.eq.s32.totalorder %s35, 1
      %p137 = scmp.ne.s32.totalorder %s132, %s134
      %p138 = scmp.eq.s32.totalorder %s35, 0
      %p139 = por %p137, %p138
      %p140 = scmp.ne.s32.totalorder %s132, %s134
      %p141 = scmp.eq.s32.totalorder %s40, 1
      %p142 = por %p140, %p141
      %p143 = scmp.ne.s32.totalorder %s134, %s135
      %p144 = scmp.eq.s32.totalorder %s40, 0
      %p145 = por %p143, %p144
      %p146 = scmp.ne.s32.totalorder %s134, %s135
      %p147 = scmp.eq.s32.totalorder %s41, 1
      %p148 = por %p146, %p147
      %p150 = scmp.ne.s32.totalorder %s135, %s149
      %p151 = scmp.eq.s32.totalorder %s41, 0
      %p152 = por %p150, %p151
      %s154 = sadd.s32 %s153, 1
      %p157 = scmp.eq.s32.totalorder %s35, 1
      %p158 = scmp.ne.s32.totalorder %s153, %s155
      %p159 = scmp.eq.s32.totalorder %s35, 0
      %p160 = por %p158, %p159
      %p161 = scmp.ne.s32.totalorder %s153, %s155
      %p162 = scmp.eq.s32.totalorder %s40, 1
      %p163 = por %p161, %p162
      %p164 = scmp.ne.s32.totalorder %s155, %s156
      %p165 = scmp.eq.s32.totalorder %s40, 0
      %p166 = por %p164, %p165
      %p167 = scmp.ne.s32.totalorder %s155, %s156
      %p168 = scmp.eq.s32.totalorder %s41, 1
      %p169 = por %p167, %p168
      %p171 = scmp.ne.s32.totalorder %s156, %s170
      %p172 = scmp.eq.s32.totalorder %s41, 0
      %p173 = por %p171, %p172
      %s175 = sadd.s32 %s174, 1
      %p178 = scmp.eq.s32.totalorder %s35, 1
      %p179 = scmp.ne.s32.totalorder %s174, %s176
      %p180 = scmp.eq.s32.totalorder %s35, 0
      %p181 = por %p179, %p180
      %p182 = scmp.ne.s32.totalorder %s174, %s176
      %p183 = scmp.eq.s32.totalorder %s40, 1
      %p184 = por %p182, %p183
      %p185 = scmp.ne.s32.totalorder %s176, %s177
      %p186 = scmp.eq.s32.totalorder %s40, 0
      %p187 = por %p185, %p186
      %p188 = scmp.ne.s32.totalorder %s176, %s177
      %p189 = scmp.eq.s32.totalorder %s41, 1
      %p190 = por %p188, %p189
      %p192 = scmp.ne.s32.totalorder %s177, %s191
      %p193 = scmp.eq.s32.totalorder %s41, 0
      %p194 = por %p192, %p193
      %s196 = sadd.s32 %s195, 1
      %p199 = scmp.eq.s32.totalorder %s35, 1
      %p200 = scmp.ne.s32.totalorder %s195, %s197
      %p201 = scmp.eq.s32.totalorder %s35, 0
      %p202 = por %p200, %p201
      %p203 = scmp.ne.s32.totalorder %s195, %s197
      %p204 = scmp.eq.s32.totalorder %s40, 1
      %p205 = por %p203, %p204
      %p206 = scmp.ne.s32.totalorder %s197, %s198
      %p207 = scmp.eq.s32.totalorder %s40, 0
      %p208 = por %p206, %p207
      %p209 = scmp.ne.s32.totalorder %s197, %s198
      %p210 = scmp.eq.s32.totalorder %s41, 1
      %p211 = por %p209, %p210
      %p213 = scmp.ne.s32.totalorder %s198, %s212
      %p214 = scmp.eq.s32.totalorder %s41, 0
      %p215 = por %p213, %p214
      %s217 = sadd.s32 %s216, 1
      %p220 = scmp.eq.s32.totalorder %s35, 1
      %p221 = scmp.ne.s32.totalorder %s216, %s218
      %p222 = scmp.eq.s32.totalorder %s35, 0
      %p223 = por %p221, %p222
      %p224 = scmp.ne.s32.totalorder %s216, %s218
      %p225 = scmp.eq.s32.totalorder %s40, 1
      %p226 = por %p224, %p225
      %p227 = scmp.ne.s32.totalorder %s218, %s219
      %p228 = scmp.eq.s32.totalorder %s40, 0
      %p229 = por %p227, %p228
      %p230 = scmp.ne.s32.totalorder %s218, %s219
      %p231 = scmp.eq.s32.totalorder %s41, 1
      %p232 = por %p230, %p231
      %p234 = scmp.ne.s32.totalorder %s219, %s233
      %p235 = scmp.eq.s32.totalorder %s41, 0
      %p236 = por %p234, %p235
      %s238 = sadd.s32 %s237, 1
      %p241 = scmp.eq.s32.totalorder %s35, 1
      %p242 = scmp.ne.s32.totalorder %s237, %s239
      %p243 = scmp.eq.s32.totalorder %s35, 0
      %p244 = por %p242, %p243
      %p245 = scmp.ne.s32.totalorder %s237, %s239
      %p246 = scmp.eq.s32.totalorder %s40, 1
      %p247 = por %p245, %p246
      %p248 = scmp.ne.s32.totalorder %s239, %s240
      %p249 = scmp.eq.s32.totalorder %s40, 0
      %p250 = por %p248, %p249
      %p251 = scmp.ne.s32.totalorder %s239, %s240
      %p252 = scmp.eq.s32.totalorder %s41, 1
      %p253 = por %p251, %p252
      %p255 = scmp.ne.s32.totalorder %s240, %s254
      %p256 = scmp.eq.s32.totalorder %s41, 0
      %p257 = por %p255, %p256
      %s259 = sadd.s32 %s258, 1
      %p262 = scmp.eq.s32.totalorder %s35, 1
      %p263 = scmp.ne.s32.totalorder %s258, %s260
      %p264 = scmp.eq.s32.totalorder %s35, 0
      %p265 = por %p263, %p264
      %p266 = scmp.ne.s32.totalorder %s258, %s260
      %p267 = scmp.eq.s32.totalorder %s40, 1
      %p268 = por %p266, %p267
      %p269 = scmp.ne.s32.totalorder %s260, %s261
      %p270 = scmp.eq.s32.totalorder %s40, 0
      %p271 = por %p269, %p270
      %p272 = scmp.ne.s32.totalorder %s260, %s261
      %p273 = scmp.eq.s32.totalorder %s41, 1
      %p274 = por %p272, %p273
      %p276 = scmp.ne.s32.totalorder %s261, %s275
      %p277 = scmp.eq.s32.totalorder %s41, 0
      %p278 = por %p276, %p277
      %s280 = sadd.s32 %s279, 1
      %p283 = scmp.eq.s32.totalorder %s35, 1
      %p284 = scmp.ne.s32.totalorder %s279, %s281
      %p285 = scmp.eq.s32.totalorder %s35, 0
      %p286 = por %p284, %p285
      %p287 = scmp.ne.s32.totalorder %s279, %s281
      %p288 = scmp.eq.s32.totalorder %s40, 1
      %p289 = por %p287, %p288
      %p290 = scmp.ne.s32.totalorder %s281, %s282
      %p291 = scmp.eq.s32.totalorder %s40, 0
      %p292 = por %p290, %p291
      %p293 = scmp.ne.s32.totalorder %s281, %s282
      %p294 = scmp.eq.s32.totalorder %s41, 1
      %p295 = por %p293, %p294
      %p297 = scmp.ne.s32.totalorder %s282, %s296
      %p298 = scmp.eq.s32.totalorder %s41, 0
      %p299 = por %p297, %p298
      %s301 = sadd.s32 %s300, 1
      %p304 = scmp.eq.s32.totalorder %s35, 1
      %p305 = scmp.ne.s32.totalorder %s300, %s302
      %p306 = scmp.eq.s32.totalorder %s35, 0
      %p307 = por %p305, %p306
      %p308 = scmp.ne.s32.totalorder %s300, %s302
      %p309 = scmp.eq.s32.totalorder %s40, 1
      %p310 = por %p308, %p309
      %p311 = scmp.ne.s32.totalorder %s302, %s303
      %p312 = scmp.eq.s32.totalorder %s40, 0
      %p313 = por %p311, %p312
      %p314 = scmp.ne.s32.totalorder %s302, %s303
      %p315 = scmp.eq.s32.totalorder %s41, 1
      %p316 = por %p314, %p315
      %p318 = scmp.ne.s32.totalorder %s303, %s317
      %p319 = scmp.eq.s32.totalorder %s41, 0
      %p320 = por %p318, %p319
      %s321 = ssub.s32 %s35, %s42
      %p322 = scmp.eq.s32.totalorder %s321, 0
      %s324 = sadd.s32 %s323, 1
      %s325 = scalar_select %p322, %s323, %s324
      %p328 = pneg %p322
      %p329 = scmp.eq.s32.totalorder %s35, 1
      %p330 = por %p328, %p329
      %p331 = scmp.ne.s32.totalorder %s323, %s326
      %p332 = scmp.eq.s32.totalorder %s35, 0
      %p333 = por %p331, %p332
      %p334 = scmp.ne.s32.totalorder %s323, %s326
      %p335 = scmp.eq.s32.totalorder %s40, 1
      %p336 = por %p334, %p335
      %p337 = scmp.ne.s32.totalorder %s326, %s327
      %p338 = scmp.eq.s32.totalorder %s40, 0
      %p339 = por %p337, %p338
      %p340 = scmp.ne.s32.totalorder %s326, %s327
      %p341 = scmp.eq.s32.totalorder %s41, 1
      %p342 = por %p340, %p341
      %p344 = scmp.ne.s32.totalorder %s327, %s343
      %p345 = scmp.eq.s32.totalorder %s41, 0
      %p346 = por %p344, %p345
      %s347 = ssub.s32 %s35, %s42
      %p348 = scmp.eq.s32.totalorder %s347, 0
      %s350 = sadd.s32 %s349, 1
      %s351 = scalar_select %p348, %s349, %s350
      %p354 = pneg %p348
      %p355 = scmp.eq.s32.totalorder %s35, 1
      %p356 = por %p354, %p355
      %p357 = scmp.ne.s32.totalorder %s349, %s352
      %p358 = scmp.eq.s32.totalorder %s35, 0
      %p359 = por %p357, %p358
      %p360 = scmp.ne.s32.totalorder %s349, %s352
      %p361 = scmp.eq.s32.totalorder %s40, 1
      %p362 = por %p360, %p361
      %p363 = scmp.ne.s32.totalorder %s352, %s353
      %p364 = scmp.eq.s32.totalorder %s40, 0
      %p365 = por %p363, %p364
      %p366 = scmp.ne.s32.totalorder %s352, %s353
      %p367 = scmp.eq.s32.totalorder %s41, 1
      %p368 = por %p366, %p367
      %p370 = scmp.ne.s32.totalorder %s353, %s369
      %p371 = scmp.eq.s32.totalorder %s41, 0
      %p372 = por %p370, %p371
      %s373 = ssub.s32 %s35, %s42
      %p374 = scmp.eq.s32.totalorder %s373, 0
      %s376 = sadd.s32 %s375, 1
      %s377 = scalar_select %p374, %s375, %s376
      %p380 = pneg %p374
      %p381 = scmp.eq.s32.totalorder %s35, 1
      %p382 = por %p380, %p381
      %p383 = scmp.ne.s32.totalorder %s375, %s378
      %p384 = scmp.eq.s32.totalorder %s35, 0
      %p385 = por %p383, %p384
      %p386 = scmp.ne.s32.totalorder %s375, %s378
      %p387 = scmp.eq.s32.totalorder %s40, 1
      %p388 = por %p386, %p387
      %p389 = scmp.ne.s32.totalorder %s378, %s379
      %p390 = scmp.eq.s32.totalorder %s40, 0
      %p391 = por %p389, %p390
      %p392 = scmp.ne.s32.totalorder %s378, %s379
      %p393 = scmp.eq.s32.totalorder %s41, 1
      %p394 = por %p392, %p393
      %p396 = scmp.ne.s32.totalorder %s379, %s395
      %p397 = scmp.eq.s32.totalorder %s41, 0
      %p398 = por %p396, %p397
      %p399 = scmp.le.s32.totalorder 1, %s35
      %p400 = scmp.lt.s32.totalorder %s35, 3
      %p401 = pnand %p399, %p400
      %p402 = pneg %p401
      // Predicated region
      $region9: #{tpu_custom_call.1} parent=5 // pred_check
        _
      $region10: #{tpu_custom_call.1} parent=5 // pred_check_branch
        %404 = sbr.rel (%p401) target = $region12
      $region11: #{tpu_custom_call.1} parent=5 // pred_region
        %s405 = ssub.s32 %s35, 1
        // Predicated region
        $region13: #{tpu_custom_call.1} parent=11 // pred_check
          %p406 = pneg %p82
        $region14: #{tpu_custom_call.1} parent=11 // pred_check_branch
          %408 = sbr.rel (%p406) target = $region16
        $region15: #{tpu_custom_call.1} parent=11 // pred_region
          _
        $region16: #{tpu_custom_call.1} parent=11 // pred_fallthru
          _
        // Predicated region
        $region17: #{tpu_custom_call.1} parent=11 // pred_check
          %p409 = pneg %p103
        $region18: #{tpu_custom_call.1} parent=11 // pred_check_branch
          %411 = sbr.rel (%p409) target = $region20
        $region19: #{tpu_custom_call.1} parent=11 // pred_region
          _
        $region20: #{tpu_custom_call.1} parent=11 // pred_fallthru
          _
        // Predicated region
        $region21: #{tpu_custom_call.1} parent=11 // pred_check
          %p412 = pneg %p124
        $region22: #{tpu_custom_call.1} parent=11 // pred_check_branch
          %414 = sbr.rel (%p412) target = $region24
        $region23: #{tpu_custom_call.1} parent=11 // pred_region
          _
        $region24: #{tpu_custom_call.1} parent=11 // pred_fallthru
          _
        // Predicated region
        $region25: #{tpu_custom_call.1} parent=11 // pred_check
          %p415 = pneg %p145
        $region26: #{tpu_custom_call.1} parent=11 // pred_check_branch
          %417 = sbr.rel (%p415) target = $region28
        $region27: #{tpu_custom_call.1} parent=11 // pred_region
          _
        $region28: #{tpu_custom_call.1} parent=11 // pred_fallthru
          _
        // Predicated region
        $region29: #{tpu_custom_call.1} parent=11 // pred_check
          %p418 = pneg %p166
        $region30: #{tpu_custom_call.1} parent=11 // pred_check_branch
          %420 = sbr.rel (%p418) target = $region32
        $region31: #{tpu_custom_call.1} parent=11 // pred_region
          _
        $region32: #{tpu_custom_call.1} parent=11 // pred_fallthru
          _
        // Predicated region
        $region33: #{tpu_custom_call.1} parent=11 // pred_check
          %p421 = pneg %p187
        $region34: #{tpu_custom_call.1} parent=11 // pred_check_branch
          %423 = sbr.rel (%p421) target = $region36
        $region35: #{tpu_custom_call.1} parent=11 // pred_region
          _
        $region36: #{tpu_custom_call.1} parent=11 // pred_fallthru
          _
        // Predicated region
        $region37: #{tpu_custom_call.1} parent=11 // pred_check
          %p424 = pneg %p208
        $region38: #{tpu_custom_call.1} parent=11 // pred_check_branch
          %426 = sbr.rel (%p424) target = $region40
        $region39: #{tpu_custom_call.1} parent=11 // pred_region
          _
        $region40: #{tpu_custom_call.1} parent=11 // pred_fallthru
          _
        // Predicated region
        $region41: #{tpu_custom_call.1} parent=11 // pred_check
          %p427 = pneg %p229
        $region42: #{tpu_custom_call.1} parent=11 // pred_check_branch
          %429 = sbr.rel (%p427) target = $region44
        $region43: #{tpu_custom_call.1} parent=11 // pred_region
          _
        $region44: #{tpu_custom_call.1} parent=11 // pred_fallthru
          _
        // Predicated region
        $region45: #{tpu_custom_call.1} parent=11 // pred_check
          %p430 = pneg %p250
        $region46: #{tpu_custom_call.1} parent=11 // pred_check_branch
          %432 = sbr.rel (%p430) target = $region48
        $region47: #{tpu_custom_call.1} parent=11 // pred_region
          _
        $region48: #{tpu_custom_call.1} parent=11 // pred_fallthru
          _
        // Predicated region
        $region49: #{tpu_custom_call.1} parent=11 // pred_check
          %p433 = pneg %p271
        $region50: #{tpu_custom_call.1} parent=11 // pred_check_branch
          %435 = sbr.rel (%p433) target = $region52
        $region51: #{tpu_custom_call.1} parent=11 // pred_region
          _
        $region52: #{tpu_custom_call.1} parent=11 // pred_fallthru
          _
        // Predicated region
        $region53: #{tpu_custom_call.1} parent=11 // pred_check
          %p436 = pneg %p292
        $region54: #{tpu_custom_call.1} parent=11 // pred_check_branch
          %438 = sbr.rel (%p436) target = $region56
        $region55: #{tpu_custom_call.1} parent=11 // pred_region
          _
        $region56: #{tpu_custom_call.1} parent=11 // pred_fallthru
          _
        // Predicated region
        $region57: #{tpu_custom_call.1} parent=11 // pred_check
          %p439 = pneg %p313
        $region58: #{tpu_custom_call.1} parent=11 // pred_check_branch
          %441 = sbr.rel (%p439) target = $region60
        $region59: #{tpu_custom_call.1} parent=11 // pred_region
          _
        $region60: #{tpu_custom_call.1} parent=11 // pred_fallthru
          _
      $region12: #{tpu_custom_call.1} parent=5 // pred_fallthru
        _
      %p442 = scmp.lt.s32.totalorder %s35, 2
      // Predicated region
      $region61: #{tpu_custom_call.1} parent=5 // pred_check
        %p443 = pneg %p442
      $region62: #{tpu_custom_call.1} parent=5 // pred_check_branch
        %445 = sbr.rel (%p443) target = $region64
      $region63: #{tpu_custom_call.1} parent=5 // pred_region
        // Predicated region
        $region65: #{tpu_custom_call.1} parent=63 // pred_check
          %p446 = pneg %p55
        $region66: #{tpu_custom_call.1} parent=63 // pred_check_branch
          %448 = sbr.rel (%p446) target = $region68
        $region67: #{tpu_custom_call.1} parent=63 // pred_region
          %p449 = scmp.lt.s32.totalorder %s35, 1
          %s450 = scalar_select %p449, %s35, 1
          %s451 = smul.addr %s450, 8
          %s452 = scalar_lea.vmem %s1, %s451
        $region68: #{tpu_custom_call.1} parent=63 // pred_fallthru
          _
      $region64: #{tpu_custom_call.1} parent=5 // pred_fallthru
        _
      %p453 = scmp.le.s32.totalorder 1, %s35
      %p454 = scmp.lt.s32.totalorder %s35, 3
      %p455 = pnand %p453, %p454
      %p456 = pneg %p455
      // Predicated region
      $region69: #{tpu_custom_call.1} parent=5 // pred_check
        _
      $region70: #{tpu_custom_call.1} parent=5 // pred_check_branch
        %458 = sbr.rel (%p455) target = $region72
      $region71: #{tpu_custom_call.1} parent=5 // pred_region
        %s459 = ssub.s32 %s35, 1
        %p460 = scmp.lt.s32.totalorder %s40, 1
        %s461 = scalar_select %p460, %s40, 1
        %s462 = smul.addr %s461, 8
        %s463 = scalar_lea.vmem %s1, %s462
        %p464 = pneg %p61
        %p465 = pneg %p58
        %p466 = pneg %p82
        %p467 = pneg %p79
        %p468 = pneg %p103
        %p469 = pneg %p100
        %p470 = pneg %p124
        %p471 = pneg %p121
        %p472 = pneg %p145
        %p473 = pneg %p142
        %p474 = pneg %p166
        %p475 = pneg %p163
        %p476 = pneg %p187
        %p477 = pneg %p184
        %p478 = pneg %p208
        %p479 = pneg %p205
        %p480 = pneg %p229
        %p481 = pneg %p226
        %p482 = pneg %p250
        %p483 = pneg %p247
        %p484 = pneg %p271
        %p485 = pneg %p268
        %p486 = pneg %p292
        %p487 = pneg %p289
        %p488 = pneg %p313
        %p489 = pneg %p310
        %p490 = pneg %p339
        %p491 = pneg %p336
        %s492 = sand.u32 %s326, 1
        %s493 = scalar_lea.sflag [#allocation5], %s492
        %s494 = sand.u32 %s326, 1
        %s495 = smul.addr %s494, 8
        %s496 = scalar_lea.vmem [#allocation4], %s495
        %p497 = pneg %p365
        %p498 = pneg %p362
        %s499 = sand.u32 %s40, 1
        %s500 = scalar_lea.sflag [#allocation7], %s499
        %s501 = sand.u32 %s352, 1
        %s502 = scalar_lea.vmem [#allocation6], %s501
        %p503 = pneg %p391
        %p504 = pneg %p388
        %s505 = sand.u32 %s40, 1
        %s506 = scalar_lea.sflag [#allocation7], %s505
        %s507 = sand.u32 %s378, 1
        %s508 = scalar_lea.vmem [#allocation8], %s507
        %p509 = scmp.lt.s32.totalorder %s40, 1
        %s510 = scalar_select %p509, %s40, 1
        %s511 = smul.addr %s510, 8
        %s512 = scalar_lea.vmem %s1, %s511
        %v514 = vld [vmem:[%s512] sm:$0xff]
        %vm515 = vcmask 261120
        %v516 = vsel %vm515, %v514, 0.0
        %517 = vadd.xlane.f32.xlu0 %v516
        %v518 = vpop.xlane.xlu0 %517
        %v519 = vrcp.pop 32.0
        %v520 = vmul.f32 %v518, %v519
        %v521 = vsub.f32 %v514, %v520
        %v522 = vmul.f32 %v521, %v521
        %v523 = vsel %vm515, %v522, 0.0
        %524 = vadd.xlane.f32.xlu0 %v523
        %v525 = vpop.xlane.xlu0 %524
        %v526 = vmul.f32 %v525, %v519
        %v527 = vadd.f32 %v526, 1e-05
        %v528 = vrsqrt.pop %v527
        %v529 = vmul.f32 %v521, %v528
        %v530 = vld [vmem:[%s2] sm:$0x1]
        %v532 = vlaneseq
        %v533 = vshrl.u32 %v532, 7
        %v534 = vsub.s32 0, %v533
        %v535 = vrot.slane %v530, %v534
        %v537 = vmul.f32 %v529, %v535
        %v538 = vld [vmem:[%s3] sm:$0x1]
        %v540 = vlaneseq
        %v541 = vshrl.u32 %v540, 7
        %v542 = vsub.s32 0, %v541
        %v543 = vrot.slane %v538, %v542
        %v545 = vadd.f32 %v537, %v543
        %v546 = vpack.c.bf16 %v545, %v545
        %v547 = vld [vmem:[%s4] sm:$0xf]
        %v548 = vld [vmem:[%s4 + $0x4] sm:$0xf]
        %v549 = vld [vmem:[%s4 + $0x8] sm:$0xf]
        %v550 = vld [vmem:[%s4 + $0xc] sm:$0xf]
        %v551 = vld [vmem:[%s5] sm:$0x1]
        %v553 = vlaneseq
        %v554 = vshrl.u32 %v553, 7
        %v555 = vsub.s32 0, %v554
        %v556 = vrot.slane %v551, %v555
        %v562 = vunpack.c.l.b16 %v547
        %v563 = vunpack.c.l.b16 %v548
        %v564 = vunpack.c.l.b16 %v549
        %v565 = vunpack.c.l.b16 %v550
        %v566 = vpack.c.b16 %v563, %v562
        %v567 = vpack.c.b16 %v565, %v564
        %v571 = vsel %vm515, %v546, 0
        %573 = vmatprep.subr.bf16.mxu0 0
        %574 = vmatpush1.bf16.msra.mxu0 0
        %575 = vmatprep.subr.bf16.mxu0 0
        %576 = vmatpush1.bf16.msra.mxu0 0
        %577 = vmatprep.subr.bf16.mxu0 0
        %578 = vmatpush1.bf16.msra.mxu0 0
        %579 = vmatprep.subr.bf16.mxu0 0
        %580 = vmatpush1.bf16.msra.mxu0 0
        %581 = vmatprep.subr.bf16.mxu0 0
        %582 = vmatpush1.bf16.msra.mxu0 0
        %583 = vmatprep.subr.bf16.mxu0 0
        %584 = vmatpush1.bf16.msra.mxu0 0
        %585 = vmatprep.subr.bf16.mxu0 0
        %586 = vmatpush1.bf16.msra.mxu0 %v567
        %587 = vmatprep.subr.bf16.mxu0 0
        %588 = vmatpush1.bf16.msra.mxu0 %v566
        %589 = vmatprep.subr.bf16.mxu0 0
        %590 = vmatpush2.bf16.msra.mxu0 0
        %591 = vmatprep.subr.bf16.mxu0 0
        %592 = vmatpush2.bf16.msra.mxu0 0
        %593 = vmatprep.subr.bf16.mxu0 0
        %594 = vmatpush2.bf16.msra.mxu0 0
        %595 = vmatprep.subr.bf16.mxu0 0
        %596 = vmatpush2.bf16.msra.mxu0 0
        %597 = vmatprep.subr.bf16.mxu0 0
        %598 = vmatpush2.bf16.msra.mxu0 0
        %599 = vmatprep.subr.bf16.mxu0 0
        %600 = vmatpush2.bf16.msra.mxu0 0
        %601 = vmatprep.subr.bf16.mxu0 0
        %602 = vmatpush2.bf16.msra.mxu0 0
        %603 = vmatprep.subr.bf16.mxu0 0
        %604 = vmatpush2.bf16.msra.mxu0 0
        %605 = vmatprep.mubr.bf16.mxu0 0
        %606 = vmatmul.mubr.bf16.gmra.mxu0 %v571
        %v607 = vpop.f32.mrf.mxu0
        %v608 = vadd.f32 %v556, %v607
        %v609 = vpop.f32.mrf.mxu0
        %v610 = vpop.f32.mrf.mxu0
        %v611 = vpop.f32.mrf.mxu0
        %612 = vdwg.mxu0
        %v613 = vmul.f32 %v608, 0.35355338
        %v614 = vlaneseq
        %v615 = vshrl.u32 %v614, 7
        %v616 = vlaneseq
        %v617 = vand.u32 %v616, 127
        %vm618 = vcmp.le.s32.totalorder %v617, %v615
        %v619 = vsel %vm618, 0.0, -1e+09
        %v620 = vpack.c.bf16 %v613, %v613
        %v621 = vpack.c.bf16 %v608, %v608
        %623 = vrot.lane.b32.xlu0 %v621, 96
        %v624 = vpop.permute.xlu0 %623
        %vm625 = vcmask 64512
        %v627 = vsel %vm625, %v620, 0
        %v630 = vsel %vm625, %v624, 0
        %632 = vmatprep.subr.bf16.mxu0 0
        %633 = vmatpush1.bf16.xpose.msra.mxu0 0
        %634 = vmatprep.subr.bf16.mxu0 0
        %635 = vmatpush1.bf16.xpose.msra.mxu0 0
        %636 = vmatprep.subr.bf16.mxu0 0
        %637 = vmatpush1.bf16.xpose.msra.mxu0 0
        %638 = vmatprep.subr.bf16.mxu0 0
        %639 = vmatpush1.bf16.xpose.msra.mxu0 0
        %640 = vmatprep.subr.bf16.mxu0 0
        %641 = vmatpush1.bf16.xpose.msra.mxu0 0
        %642 = vmatprep.subr.bf16.mxu0 0
        %643 = vmatpush1.bf16.xpose.msra.mxu0 0
        %644 = vmatprep.subr.bf16.mxu0 0
        %645 = vmatpush1.bf16.xpose.msra.mxu0 0
        %646 = vmatprep.subr.bf16.mxu0 0
        %647 = vmatpush1.bf16.xpose.msra.mxu0 %v630
        %648 = vmatprep.subr.bf16.mxu0 0
        %649 = vmatpush2.bf16.xpose.msra.mxu0 0
        %650 = vmatprep.subr.bf16.mxu0 0
        %651 = vmatpush2.bf16.xpose.msra.mxu0 0
        %652 = vmatprep.subr.bf16.mxu0 0
        %653 = vmatpush2.bf16.xpose.msra.mxu0 0
        %654 = vmatprep.subr.bf16.mxu0 0
        %655 = vmatpush2.bf16.xpose.msra.mxu0 0
        %656 = vmatprep.subr.bf16.mxu0 0
        %657 = vmatpush2.bf16.xpose.msra.mxu0 0
        %658 = vmatprep.subr.bf16.mxu0 0
        %659 = vmatpush2.bf16.xpose.msra.mxu0 0
        %660 = vmatprep.subr.bf16.mxu0 0
        %661 = vmatpush2.bf16.xpose.msra.mxu0 0
        %662 = vmatprep.subr.bf16.mxu0 0
        %663 = vmatpush2.bf16.xpose.msra.mxu0 0
        %664 = vmatprep.mubr.bf16.mxu0 0
        %665 = vmatmul.mubr.bf16.gmra.mxu0 %v627
        %v666 = vpop.f32.mrf.mxu0
        %v667 = vadd.f32 %v619, %v666
        %v668 = vpop.f32.mrf.mxu0
        %v669 = vpop.f32.mrf.mxu0
        %v670 = vpop.f32.mrf.mxu0
        %671 = vdwg.mxu0
        %v672 = vsel %vm625, %v667, -inf
        %673 = vmax.xlane.f32.xlu0 %v672
        %v674 = vpop.xlane.xlu0 %673
        %v675 = vsub.f32 %v667, %v674
        %v676 = vmul.f32 %v675, 1.442695
        %v677 = vpow.pop %v676
        %v678 = vsel %vm625, %v677, 0.0
        %679 = vadd.xlane.f32.xlu0 %v678
        %v680 = vpop.xlane.xlu0 %679
        %v681 = vrcp.pop %v680
        %v682 = vmul.f32 %v677, %v681
        %v683 = vpack.c.bf16 %v682, %v682
        %684 = vrot.lane.b32.xlu0 %v621, 64
        %v685 = vpop.permute.xlu0 %684
        %v687 = vsel %vm625, %v683, 0
        %vm689 = vcmask 1043456
        %v691 = vsel %vm689, %v685, 0
        %693 = vmatprep.subr.bf16.mxu0 0
        %694 = vmatpush1.bf16.msra.mxu0 0
        %695 = vmatprep.subr.bf16.mxu0 0
        %696 = vmatpush1.bf16.msra.mxu0 0
        %697 = vmatprep.subr.bf16.mxu0 0
        %698 = vmatpush1.bf16.msra.mxu0 0
        %699 = vmatprep.subr.bf16.mxu0 0
        %700 = vmatpush1.bf16.msra.mxu0 0
        %701 = vmatprep.subr.bf16.mxu0 0
        %702 = vmatpush1.bf16.msra.mxu0 0
        %703 = vmatprep.subr.bf16.mxu0 0
        %704 = vmatpush1.bf16.msra.mxu0 0
        %705 = vmatprep.subr.bf16.mxu0 0
        %706 = vmatpush1.bf16.msra.mxu0 0
        %707 = vmatprep.subr.bf16.mxu0 0
        %708 = vmatpush1.bf16.msra.mxu0 %v691
        %709 = vmatprep.subr.bf16.mxu0 0
        %710 = vmatpush2.bf16.msra.mxu0 0
        %711 = vmatprep.subr.bf16.mxu0 0
        %712 = vmatpush2.bf16.msra.mxu0 0
        %713 = vmatprep.subr.bf16.mxu0 0
        %714 = vmatpush2.bf16.msra.mxu0 0
        %715 = vmatprep.subr.bf16.mxu0 0
        %716 = vmatpush2.bf16.msra.mxu0 0
        %717 = vmatprep.subr.bf16.mxu0 0
        %718 = vmatpush2.bf16.msra.mxu0 0
        %719 = vmatprep.subr.bf16.mxu0 0
        %720 = vmatpush2.bf16.msra.mxu0 0
        %721 = vmatprep.subr.bf16.mxu0 0
        %722 = vmatpush2.bf16.msra.mxu0 0
        %723 = vmatprep.subr.bf16.mxu0 0
        %724 = vmatpush2.bf16.msra.mxu0 0
        %725 = vmatprep.mubr.bf16.mxu0 0
        %726 = vmatmul.mubr.bf16.gmra.mxu0 %v687
        %v727 = vpop.f32.mrf.mxu0
        %v728 = vadd.f32 0.0, %v727
        %v729 = vpop.f32.mrf.mxu0
        %v730 = vpop.f32.mrf.mxu0
        %v731 = vpop.f32.mrf.mxu0
        %732 = vdwg.mxu0
        %v733 = vpack.c.bf16 %v728, %v728
        %v734 = vld [vmem:[%s6] sm:$0xf]
        %736 = vrot.lane.b32.xlu0 %v620, 120
        %v737 = vpop.permute.xlu0 %736
        %738 = vrot.lane.b32.xlu0 %v621, 88
        %v739 = vpop.permute.xlu0 %738
        %v741 = vsel %vm625, %v737, 0
        %v744 = vsel %vm625, %v739, 0
        %746 = vmatprep.subr.bf16.mxu0 0
        %747 = vmatpush1.bf16.xpose.msra.mxu0 0
        %748 = vmatprep.subr.bf16.mxu0 0
        %749 = vmatpush1.bf16.xpose.msra.mxu0 0
        %750 = vmatprep.subr.bf16.mxu0 0
        %751 = vmatpush1.bf16.xpose.msra.mxu0 0
        %752 = vmatprep.subr.bf16.mxu0 0
        %753 = vmatpush1.bf16.xpose.msra.mxu0 0
        %754 = vmatprep.subr.bf16.mxu0 0
        %755 = vmatpush1.bf16.xpose.msra.mxu0 0
        %756 = vmatprep.subr.bf16.mxu0 0
        %757 = vmatpush1.bf16.xpose.msra.mxu0 0
        %758 = vmatprep.subr.bf16.mxu0 0
        %759 = vmatpush1.bf16.xpose.msra.mxu0 0
        %760 = vmatprep.subr.bf16.mxu0 0
        %761 = vmatpush1.bf16.xpose.msra.mxu0 %v744
        %762 = vmatprep.subr.bf16.mxu0 0
        %763 = vmatpush2.bf16.xpose.msra.mxu0 0
        %764 = vmatprep.subr.bf16.mxu0 0
        %765 = vmatpush2.bf16.xpose.msra.mxu0 0
        %766 = vmatprep.subr.bf16.mxu0 0
        %767 = vmatpush2.bf16.xpose.msra.mxu0 0
        %768 = vmatprep.subr.bf16.mxu0 0
        %769 = vmatpush2.bf16.xpose.msra.mxu0 0
        %770 = vmatprep.subr.bf16.mxu0 0
        %771 = vmatpush2.bf16.xpose.msra.mxu0 0
        %772 = vmatprep.subr.bf16.mxu0 0
        %773 = vmatpush2.bf16.xpose.msra.mxu0 0
        %774 = vmatprep.subr.bf16.mxu0 0
        %775 = vmatpush2.bf16.xpose.msra.mxu0 0
        %776 = vmatprep.subr.bf16.mxu0 0
        %777 = vmatpush2.bf16.xpose.msra.mxu0 0
        %778 = vmatprep.mubr.bf16.mxu0 0
        %779 = vmatmul.mubr.bf16.gmra.mxu0 %v741
        %v780 = vpop.f32.mrf.mxu0
        %v781 = vadd.f32 %v619, %v780
        %v782 = vpop.f32.mrf.mxu0
        %v783 = vpop.f32.mrf.mxu0
        %v784 = vpop.f32.mrf.mxu0
        %785 = vdwg.mxu0
        %v786 = vsel %vm625, %v781, -inf
        %787 = vmax.xlane.f32.xlu0 %v786
        %v788 = vpop.xlane.xlu0 %787
        %v789 = vsub.f32 %v781, %v788
        %v790 = vmul.f32 %v789, 1.442695
        %v791 = vpow.pop %v790
        %v792 = vsel %vm625, %v791, 0.0
        %793 = vadd.xlane.f32.xlu0 %v792
        %v794 = vpop.xlane.xlu0 %793
        %v795 = vrcp.pop %v794
        %v796 = vmul.f32 %v791, %v795
        %v797 = vpack.c.bf16 %v796, %v796
        %798 = vrot.lane.b32.xlu0 %v621, 56
        %v799 = vpop.permute.xlu0 %798
        %v801 = vsel %vm625, %v797, 0
        %v804 = vsel %vm689, %v799, 0
        %806 = vmatprep.subr.bf16.mxu0 0
        %807 = vmatpush1.bf16.msra.mxu0 0
        %808 = vmatprep.subr.bf16.mxu0 0
        %809 = vmatpush1.bf16.msra.mxu0 0
        %810 = vmatprep.subr.bf16.mxu0 0
        %811 = vmatpush1.bf16.msra.mxu0 0
        %812 = vmatprep.subr.bf16.mxu0 0
        %813 = vmatpush1.bf16.msra.mxu0 0
        %814 = vmatprep.subr.bf16.mxu0 0
        %815 = vmatpush1.bf16.msra.mxu0 0
        %816 = vmatprep.subr.bf16.mxu0 0
        %817 = vmatpush1.bf16.msra.mxu0 0
        %818 = vmatprep.subr.bf16.mxu0 0
        %819 = vmatpush1.bf16.msra.mxu0 0
        %820 = vmatprep.subr.bf16.mxu0 0
        %821 = vmatpush1.bf16.msra.mxu0 %v804
        %822 = vmatprep.subr.bf16.mxu0 0
        %823 = vmatpush2.bf16.msra.mxu0 0
        %824 = vmatprep.subr.bf16.mxu0 0
        %825 = vmatpush2.bf16.msra.mxu0 0
        %826 = vmatprep.subr.bf16.mxu0 0
        %827 = vmatpush2.bf16.msra.mxu0 0
        %828 = vmatprep.subr.bf16.mxu0 0
        %829 = vmatpush2.bf16.msra.mxu0 0
        %830 = vmatprep.subr.bf16.mxu0 0
        %831 = vmatpush2.bf16.msra.mxu0 0
        %832 = vmatprep.subr.bf16.mxu0 0
        %833 = vmatpush2.bf16.msra.mxu0 0
        %834 = vmatprep.subr.bf16.mxu0 0
        %835 = vmatpush2.bf16.msra.mxu0 0
        %836 = vmatprep.subr.bf16.mxu0 0
        %837 = vmatpush2.bf16.msra.mxu0 0
        %838 = vmatprep.mubr.bf16.mxu0 0
        %839 = vmatmul.mubr.bf16.gmra.mxu0 %v801
        %v840 = vpop.f32.mrf.mxu0
        %v841 = vadd.f32 0.0, %v840
        %v842 = vpop.f32.mrf.mxu0
        %v843 = vpop.f32.mrf.mxu0
        %v844 = vpop.f32.mrf.mxu0
        %845 = vdwg.mxu0
        %v846 = vpack.c.bf16 %v841, %v841
        %v847 = vld [vmem:[%s6 + $0x4] sm:$0xf]
        %v849 = vsel %vm625, %v846, 0
        %v852 = vsel %vm689, %v847, 0
        %854 = vmatprep.subr.bf16.mxu0 0
        %855 = vmatpush1.bf16.msra.mxu0 0
        %856 = vmatprep.subr.bf16.mxu0 0
        %857 = vmatpush1.bf16.msra.mxu0 0
        %858 = vmatprep.subr.bf16.mxu0 0
        %859 = vmatpush1.bf16.msra.mxu0 0
        %860 = vmatprep.subr.bf16.mxu0 0
        %861 = vmatpush1.bf16.msra.mxu0 0
        %862 = vmatprep.subr.bf16.mxu0 0
        %863 = vmatpush1.bf16.msra.mxu0 0
        %864 = vmatprep.subr.bf16.mxu0 0
        %865 = vmatpush1.bf16.msra.mxu0 0
        %866 = vmatprep.subr.bf16.mxu0 0
        %867 = vmatpush1.bf16.msra.mxu0 0
        %868 = vmatprep.subr.bf16.mxu0 0
        %869 = vmatpush1.bf16.msra.mxu0 %v852
        %870 = vmatprep.subr.bf16.mxu0 0
        %871 = vmatpush2.bf16.msra.mxu0 0
        %872 = vmatprep.subr.bf16.mxu0 0
        %873 = vmatpush2.bf16.msra.mxu0 0
        %874 = vmatprep.subr.bf16.mxu0 0
        %875 = vmatpush2.bf16.msra.mxu0 0
        %876 = vmatprep.subr.bf16.mxu0 0
        %877 = vmatpush2.bf16.msra.mxu0 0
        %878 = vmatprep.subr.bf16.mxu0 0
        %879 = vmatpush2.bf16.msra.mxu0 0
        %880 = vmatprep.subr.bf16.mxu0 0
        %881 = vmatpush2.bf16.msra.mxu0 0
        %882 = vmatprep.subr.bf16.mxu0 0
        %883 = vmatpush2.bf16.msra.mxu0 0
        %884 = vmatprep.subr.bf16.mxu0 0
        %885 = vmatpush2.bf16.msra.mxu0 0
        %886 = vmatprep.mubr.bf16.mxu0 0
        %887 = vmatmul.mubr.bf16.gmra.mxu0 %v849
        %v888 = vpop.f32.mrf.mxu0
        %v889 = vadd.f32 0.0, %v888
        %v890 = vpop.f32.mrf.mxu0
        %v891 = vpop.f32.mrf.mxu0
        %v892 = vpop.f32.mrf.mxu0
        %893 = vdwg.mxu0
        %v895 = vsel %vm625, %v733, 0
        %v898 = vsel %vm689, %v734, 0
        %900 = vmatprep.subr.bf16.mxu0 0
        %901 = vmatpush1.bf16.msra.mxu0 0
        %902 = vmatprep.subr.bf16.mxu0 0
        %903 = vmatpush1.bf16.msra.mxu0 0
        %904 = vmatprep.subr.bf16.mxu0 0
        %905 = vmatpush1.bf16.msra.mxu0 0
        %906 = vmatprep.subr.bf16.mxu0 0
        %907 = vmatpush1.bf16.msra.mxu0 0
        %908 = vmatprep.subr.bf16.mxu0 0
        %909 = vmatpush1.bf16.msra.mxu0 0
        %910 = vmatprep.subr.bf16.mxu0 0
        %911 = vmatpush1.bf16.msra.mxu0 0
        %912 = vmatprep.subr.bf16.mxu0 0
        %913 = vmatpush1.bf16.msra.mxu0 0
        %914 = vmatprep.subr.bf16.mxu0 0
        %915 = vmatpush1.bf16.msra.mxu0 %v898
        %916 = vmatprep.subr.bf16.mxu0 0
        %917 = vmatpush2.bf16.msra.mxu0 0
        %918 = vmatprep.subr.bf16.mxu0 0
        %919 = vmatpush2.bf16.msra.mxu0 0
        %920 = vmatprep.subr.bf16.mxu0 0
        %921 = vmatpush2.bf16.msra.mxu0 0
        %922 = vmatprep.subr.bf16.mxu0 0
        %923 = vmatpush2.bf16.msra.mxu0 0
        %924 = vmatprep.subr.bf16.mxu0 0
        %925 = vmatpush2.bf16.msra.mxu0 0
        %926 = vmatprep.subr.bf16.mxu0 0
        %927 = vmatpush2.bf16.msra.mxu0 0
        %928 = vmatprep.subr.bf16.mxu0 0
        %929 = vmatpush2.bf16.msra.mxu0 0
        %930 = vmatprep.subr.bf16.mxu0 0
        %931 = vmatpush2.bf16.msra.mxu0 0
        %932 = vmatprep.mubr.bf16.mxu0 0
        %933 = vmatmul.mubr.bf16.gmra.mxu0 %v895
        %v934 = vpop.f32.mrf.mxu0
        %v935 = vadd.f32 %v889, %v934
        %v936 = vpop.f32.mrf.mxu0
        %v937 = vpop.f32.mrf.mxu0
        %v938 = vpop.f32.mrf.mxu0
        %939 = vdwg.mxu0
        %940 = vrot.lane.b32.xlu0 %v620, 112
        %v941 = vpop.permute.xlu0 %940
        %942 = vrot.lane.b32.xlu0 %v621, 80
        %v943 = vpop.permute.xlu0 %942
        %v945 = vsel %vm625, %v941, 0
        %v948 = vsel %vm625, %v943, 0
        %950 = vmatprep.subr.bf16.mxu0 0
        %951 = vmatpush1.bf16.xpose.msra.mxu0 0
        %952 = vmatprep.subr.bf16.mxu0 0
        %953 = vmatpush1.bf16.xpose.msra.mxu0 0
        %954 = vmatprep.subr.bf16.mxu0 0
        %955 = vmatpush1.bf16.xpose.msra.mxu0 0
        %956 = vmatprep.subr.bf16.mxu0 0
        %957 = vmatpush1.bf16.xpose.msra.mxu0 0
        %958 = vmatprep.subr.bf16.mxu0 0
        %959 = vmatpush1.bf16.xpose.msra.mxu0 0
        %960 = vmatprep.subr.bf16.mxu0 0
        %961 = vmatpush1.bf16.xpose.msra.mxu0 0
        %962 = vmatprep.subr.bf16.mxu0 0
        %963 = vmatpush1.bf16.xpose.msra.mxu0 0
        %964 = vmatprep.subr.bf16.mxu0 0
        %965 = vmatpush1.bf16.xpose.msra.mxu0 %v948
        %966 = vmatprep.subr.bf16.mxu0 0
        %967 = vmatpush2.bf16.xpose.msra.mxu0 0
        %968 = vmatprep.subr.bf16.mxu0 0
        %969 = vmatpush2.bf16.xpose.msra.mxu0 0
        %970 = vmatprep.subr.bf16.mxu0 0
        %971 = vmatpush2.bf16.xpose.msra.mxu0 0
        %972 = vmatprep.subr.bf16.mxu0 0
        %973 = vmatpush2.bf16.xpose.msra.mxu0 0
        %974 = vmatprep.subr.bf16.mxu0 0
        %975 = vmatpush2.bf16.xpose.msra.mxu0 0
        %976 = vmatprep.subr.bf16.mxu0 0
        %977 = vmatpush2.bf16.xpose.msra.mxu0 0
        %978 = vmatprep.subr.bf16.mxu0 0
        %979 = vmatpush2.bf16.xpose.msra.mxu0 0
        %980 = vmatprep.subr.bf16.mxu0 0
        %981 = vmatpush2.bf16.xpose.msra.mxu0 0
        %982 = vmatprep.mubr.bf16.mxu0 0
        %983 = vmatmul.mubr.bf16.gmra.mxu0 %v945
        %v984 = vpop.f32.mrf.mxu0
        %v985 = vadd.f32 %v619, %v984
        %v986 = vpop.f32.mrf.mxu0
        %v987 = vpop.f32.mrf.mxu0
        %v988 = vpop.f32.mrf.mxu0
        %989 = vdwg.mxu0
        %v990 = vsel %vm625, %v985, -inf
        %991 = vmax.xlane.f32.xlu0 %v990
        %v992 = vpop.xlane.xlu0 %991
        %v993 = vsub.f32 %v985, %v992
        %v994 = vmul.f32 %v993, 1.442695
        %v995 = vpow.pop %v994
        %v996 = vsel %vm625, %v995, 0.0
        %997 = vadd.xlane.f32.xlu0 %v996
        %v998 = vpop.xlane.xlu0 %997
        %v999 = vrcp.pop %v998
        %v1000 = vmul.f32 %v995, %v999
        %v1001 = vpack.c.bf16 %v1000, %v1000
        %1002 = vrot.lane.b32.xlu0 %v621, 48
        %v1003 = vpop.permute.xlu0 %1002
        %v1005 = vsel %vm625, %v1001, 0
        %v1008 = vsel %vm689, %v1003, 0
        %1010 = vmatprep.subr.bf16.mxu0 0
        %1011 = vmatpush1.bf16.msra.mxu0 0
        %1012 = vmatprep.subr.bf16.mxu0 0
        %1013 = vmatpush1.bf16.msra.mxu0 0
        %1014 = vmatprep.subr.bf16.mxu0 0
        %1015 = vmatpush1.bf16.msra.mxu0 0
        %1016 = vmatprep.subr.bf16.mxu0 0
        %1017 = vmatpush1.bf16.msra.mxu0 0
        %1018 = vmatprep.subr.bf16.mxu0 0
        %1019 = vmatpush1.bf16.msra.mxu0 0
        %1020 = vmatprep.subr.bf16.mxu0 0
        %1021 = vmatpush1.bf16.msra.mxu0 0
        %1022 = vmatprep.subr.bf16.mxu0 0
        %1023 = vmatpush1.bf16.msra.mxu0 0
        %1024 = vmatprep.subr.bf16.mxu0 0
        %1025 = vmatpush1.bf16.msra.mxu0 %v1008
        %1026 = vmatprep.subr.bf16.mxu0 0
        %1027 = vmatpush2.bf16.msra.mxu0 0
        %1028 = vmatprep.subr.bf16.mxu0 0
        %1029 = vmatpush2.bf16.msra.mxu0 0
        %1030 = vmatprep.subr.bf16.mxu0 0
        %1031 = vmatpush2.bf16.msra.mxu0 0
        %1032 = vmatprep.subr.bf16.mxu0 0
        %1033 = vmatpush2.bf16.msra.mxu0 0
        %1034 = vmatprep.subr.bf16.mxu0 0
        %1035 = vmatpush2.bf16.msra.mxu0 0
        %1036 = vmatprep.subr.bf16.mxu0 0
        %1037 = vmatpush2.bf16.msra.mxu0 0
        %1038 = vmatprep.subr.bf16.mxu0 0
        %1039 = vmatpush2.bf16.msra.mxu0 0
        %1040 = vmatprep.subr.bf16.mxu0 0
        %1041 = vmatpush2.bf16.msra.mxu0 0
        %1042 = vmatprep.mubr.bf16.mxu0 0
        %1043 = vmatmul.mubr.bf16.gmra.mxu0 %v1005
        %v1044 = vpop.f32.mrf.mxu0
        %v1045 = vadd.f32 0.0, %v1044
        %v1046 = vpop.f32.mrf.mxu0
        %v1047 = vpop.f32.mrf.mxu0
        %v1048 = vpop.f32.mrf.mxu0
        %1049 = vdwg.mxu0
        %v1050 = vpack.c.bf16 %v1045, %v1045
        %v1051 = vld [vmem:[%s6 + $0x8] sm:$0xf]
        %v1053 = vsel %vm625, %v1050, 0
        %v1056 = vsel %vm689, %v1051, 0
        %1058 = vmatprep.subr.bf16.mxu0 0
        %1059 = vmatpush1.bf16.msra.mxu0 0
        %1060 = vmatprep.subr.bf16.mxu0 0
        %1061 = vmatpush1.bf16.msra.mxu0 0
        %1062 = vmatprep.subr.bf16.mxu0 0
        %1063 = vmatpush1.bf16.msra.mxu0 0
        %1064 = vmatprep.subr.bf16.mxu0 0
        %1065 = vmatpush1.bf16.msra.mxu0 0
        %1066 = vmatprep.subr.bf16.mxu0 0
        %1067 = vmatpush1.bf16.msra.mxu0 0
        %1068 = vmatprep.subr.bf16.mxu0 0
        %1069 = vmatpush1.bf16.msra.mxu0 0
        %1070 = vmatprep.subr.bf16.mxu0 0
        %1071 = vmatpush1.bf16.msra.mxu0 0
        %1072 = vmatprep.subr.bf16.mxu0 0
        %1073 = vmatpush1.bf16.msra.mxu0 %v1056
        %1074 = vmatprep.subr.bf16.mxu0 0
        %1075 = vmatpush2.bf16.msra.mxu0 0
        %1076 = vmatprep.subr.bf16.mxu0 0
        %1077 = vmatpush2.bf16.msra.mxu0 0
        %1078 = vmatprep.subr.bf16.mxu0 0
        %1079 = vmatpush2.bf16.msra.mxu0 0
        %1080 = vmatprep.subr.bf16.mxu0 0
        %1081 = vmatpush2.bf16.msra.mxu0 0
        %1082 = vmatprep.subr.bf16.mxu0 0
        %1083 = vmatpush2.bf16.msra.mxu0 0
        %1084 = vmatprep.subr.bf16.mxu0 0
        %1085 = vmatpush2.bf16.msra.mxu0 0
        %1086 = vmatprep.subr.bf16.mxu0 0
        %1087 = vmatpush2.bf16.msra.mxu0 0
        %1088 = vmatprep.subr.bf16.mxu0 0
        %1089 = vmatpush2.bf16.msra.mxu0 0
        %1090 = vmatprep.mubr.bf16.mxu0 0
        %1091 = vmatmul.mubr.bf16.gmra.mxu0 %v1053
        %v1092 = vpop.f32.mrf.mxu0
        %v1093 = vadd.f32 0.0, %v1092
        %v1094 = vpop.f32.mrf.mxu0
        %v1095 = vpop.f32.mrf.mxu0
        %v1096 = vpop.f32.mrf.mxu0
        %1097 = vdwg.mxu0
        %v1098 = vadd.f32 %v935, %v1093
        %1099 = vrot.lane.b32.xlu0 %v620, 104
        %v1100 = vpop.permute.xlu0 %1099
        %1101 = vrot.lane.b32.xlu0 %v621, 72
        %v1102 = vpop.permute.xlu0 %1101
        %v1104 = vsel %vm625, %v1100, 0
        %v1107 = vsel %vm625, %v1102, 0
        %1109 = vmatprep.subr.bf16.mxu0 0
        %1110 = vmatpush1.bf16.xpose.msra.mxu0 0
        %1111 = vmatprep.subr.bf16.mxu0 0
        %1112 = vmatpush1.bf16.xpose.msra.mxu0 0
        %1113 = vmatprep.subr.bf16.mxu0 0
        %1114 = vmatpush1.bf16.xpose.msra.mxu0 0
        %1115 = vmatprep.subr.bf16.mxu0 0
        %1116 = vmatpush1.bf16.xpose.msra.mxu0 0
        %1117 = vmatprep.subr.bf16.mxu0 0
        %1118 = vmatpush1.bf16.xpose.msra.mxu0 0
        %1119 = vmatprep.subr.bf16.mxu0 0
        %1120 = vmatpush1.bf16.xpose.msra.mxu0 0
        %1121 = vmatprep.subr.bf16.mxu0 0
        %1122 = vmatpush1.bf16.xpose.msra.mxu0 0
        %1123 = vmatprep.subr.bf16.mxu0 0
        %1124 = vmatpush1.bf16.xpose.msra.mxu0 %v1107
        %1125 = vmatprep.subr.bf16.mxu0 0
        %1126 = vmatpush2.bf16.xpose.msra.mxu0 0
        %1127 = vmatprep.subr.bf16.mxu0 0
        %1128 = vmatpush2.bf16.xpose.msra.mxu0 0
        %1129 = vmatprep.subr.bf16.mxu0 0
        %1130 = vmatpush2.bf16.xpose.msra.mxu0 0
        %1131 = vmatprep.subr.bf16.mxu0 0
        %1132 = vmatpush2.bf16.xpose.msra.mxu0 0
        %1133 = vmatprep.subr.bf16.mxu0 0
        %1134 = vmatpush2.bf16.xpose.msra.mxu0 0
        %1135 = vmatprep.subr.bf16.mxu0 0
        %1136 = vmatpush2.bf16.xpose.msra.mxu0 0
        %1137 = vmatprep.subr.bf16.mxu0 0
        %1138 = vmatpush2.bf16.xpose.msra.mxu0 0
        %1139 = vmatprep.subr.bf16.mxu0 0
        %1140 = vmatpush2.bf16.xpose.msra.mxu0 0
        %1141 = vmatprep.mubr.bf16.mxu0 0
        %1142 = vmatmul.mubr.bf16.gmra.mxu0 %v1104
        %v1143 = vpop.f32.mrf.mxu0
        %v1144 = vadd.f32 %v619, %v1143
        %v1145 = vpop.f32.mrf.mxu0
        %v1146 = vpop.f32.mrf.mxu0
        %v1147 = vpop.f32.mrf.mxu0
        %1148 = vdwg.mxu0
        %v1149 = vsel %vm625, %v1144, -inf
        %1150 = vmax.xlane.f32.xlu0 %v1149
        %v1151 = vpop.xlane.xlu0 %1150
        %v1152 = vsub.f32 %v1144, %v1151
        %v1153 = vmul.f32 %v1152, 1.442695
        %v1154 = vpow.pop %v1153
        %v1155 = vsel %vm625, %v1154, 0.0
        %1156 = vadd.xlane.f32.xlu0 %v1155
        %v1157 = vpop.xlane.xlu0 %1156
        %v1158 = vrcp.pop %v1157
        %v1159 = vmul.f32 %v1154, %v1158
        %v1160 = vpack.c.bf16 %v1159, %v1159
        %1161 = vrot.lane.b32.xlu0 %v621, 40
        %v1162 = vpop.permute.xlu0 %1161
        %v1164 = vsel %vm625, %v1160, 0
        %v1167 = vsel %vm689, %v1162, 0
        %1169 = vmatprep.subr.bf16.mxu0 0
        %1170 = vmatpush1.bf16.msra.mxu0 0
        %1171 = vmatprep.subr.bf16.mxu0 0
        %1172 = vmatpush1.bf16.msra.mxu0 0
        %1173 = vmatprep.subr.bf16.mxu0 0
        %1174 = vmatpush1.bf16.msra.mxu0 0
        %1175 = vmatprep.subr.bf16.mxu0 0
        %1176 = vmatpush1.bf16.msra.mxu0 0
        %1177 = vmatprep.subr.bf16.mxu0 0
        %1178 = vmatpush1.bf16.msra.mxu0 0
        %1179 = vmatprep.subr.bf16.mxu0 0
        %1180 = vmatpush1.bf16.msra.mxu0 0
        %1181 = vmatprep.subr.bf16.mxu0 0
        %1182 = vmatpush1.bf16.msra.mxu0 0
        %1183 = vmatprep.subr.bf16.mxu0 0
        %1184 = vmatpush1.bf16.msra.mxu0 %v1167
        %1185 = vmatprep.subr.bf16.mxu0 0
        %1186 = vmatpush2.bf16.msra.mxu0 0
        %1187 = vmatprep.subr.bf16.mxu0 0
        %1188 = vmatpush2.bf16.msra.mxu0 0
        %1189 = vmatprep.subr.bf16.mxu0 0
        %1190 = vmatpush2.bf16.msra.mxu0 0
        %1191 = vmatprep.subr.bf16.mxu0 0
        %1192 = vmatpush2.bf16.msra.mxu0 0
        %1193 = vmatprep.subr.bf16.mxu0 0
        %1194 = vmatpush2.bf16.msra.mxu0 0
        %1195 = vmatprep.subr.bf16.mxu0 0
        %1196 = vmatpush2.bf16.msra.mxu0 0
        %1197 = vmatprep.subr.bf16.mxu0 0
        %1198 = vmatpush2.bf16.msra.mxu0 0
        %1199 = vmatprep.subr.bf16.mxu0 0
        %1200 = vmatpush2.bf16.msra.mxu0 0
        %1201 = vmatprep.mubr.bf16.mxu0 0
        %1202 = vmatmul.mubr.bf16.gmra.mxu0 %v1164
        %v1203 = vpop.f32.mrf.mxu0
        %v1204 = vadd.f32 0.0, %v1203
        %v1205 = vpop.f32.mrf.mxu0
        %v1206 = vpop.f32.mrf.mxu0
        %v1207 = vpop.f32.mrf.mxu0
        %1208 = vdwg.mxu0
        %v1209 = vpack.c.bf16 %v1204, %v1204
        %v1210 = vld [vmem:[%s6 + $0xc] sm:$0xf]
        %v1212 = vsel %vm625, %v1209, 0
        %v1215 = vsel %vm689, %v1210, 0
        %1217 = vmatprep.subr.bf16.mxu0 0
        %1218 = vmatpush1.bf16.msra.mxu0 0
        %1219 = vmatprep.subr.bf16.mxu0 0
        %1220 = vmatpush1.bf16.msra.mxu0 0
        %1221 = vmatprep.subr.bf16.mxu0 0
        %1222 = vmatpush1.bf16.msra.mxu0 0
        %1223 = vmatprep.subr.bf16.mxu0 0
        %1224 = vmatpush1.bf16.msra.mxu0 0
        %1225 = vmatprep.subr.bf16.mxu0 0
        %1226 = vmatpush1.bf16.msra.mxu0 0
        %1227 = vmatprep.subr.bf16.mxu0 0
        %1228 = vmatpush1.bf16.msra.mxu0 0
        %1229 = vmatprep.subr.bf16.mxu0 0
        %1230 = vmatpush1.bf16.msra.mxu0 0
        %1231 = vmatprep.subr.bf16.mxu0 0
        %1232 = vmatpush1.bf16.msra.mxu0 %v1215
        %1233 = vmatprep.subr.bf16.mxu0 0
        %1234 = vmatpush2.bf16.msra.mxu0 0
        %1235 = vmatprep.subr.bf16.mxu0 0
        %1236 = vmatpush2.bf16.msra.mxu0 0
        %1237 = vmatprep.subr.bf16.mxu0 0
        %1238 = vmatpush2.bf16.msra.mxu0 0
        %1239 = vmatprep.subr.bf16.mxu0 0
        %1240 = vmatpush2.bf16.msra.mxu0 0
        %1241 = vmatprep.subr.bf16.mxu0 0
        %1242 = vmatpush2.bf16.msra.mxu0 0
        %1243 = vmatprep.subr.bf16.mxu0 0
        %1244 = vmatpush2.bf16.msra.mxu0 0
        %1245 = vmatprep.subr.bf16.mxu0 0
        %1246 = vmatpush2.bf16.msra.mxu0 0
        %1247 = vmatprep.subr.bf16.mxu0 0
        %1248 = vmatpush2.bf16.msra.mxu0 0
        %1249 = vmatprep.mubr.bf16.mxu0 0
        %1250 = vmatmul.mubr.bf16.gmra.mxu0 %v1212
        %v1251 = vpop.f32.mrf.mxu0
        %v1252 = vadd.f32 0.0, %v1251
        %v1253 = vpop.f32.mrf.mxu0
        %v1254 = vpop.f32.mrf.mxu0
        %v1255 = vpop.f32.mrf.mxu0
        %1256 = vdwg.mxu0
        %v1257 = vadd.f32 %v1098, %v1252
        %v1258 = vadd.f32 %v514, %v1257
        %v1259 = vld [vmem:[%s7] sm:$0x1]
        %v1261 = vlaneseq
        %v1262 = vshrl.u32 %v1261, 7
        %v1263 = vsub.s32 0, %v1262
        %v1264 = vrot.slane %v1259, %v1263
        %v1266 = vadd.f32 %v1258, %v1264
        %v1267 = vsel %vm515, %v1266, 0.0
        %1268 = vadd.xlane.f32.xlu0 %v1267
        %v1269 = vpop.xlane.xlu0 %1268
        %v1270 = vmul.f32 %v1269, %v519
        %v1271 = vsub.f32 %v1266, %v1270
        %v1272 = vmul.f32 %v1271, %v1271
        %v1273 = vsel %vm515, %v1272, 0.0
        %1274 = vadd.xlane.f32.xlu0 %v1273
        %v1275 = vpop.xlane.xlu0 %1274
        %v1276 = vmul.f32 %v1275, %v519
        %v1277 = vadd.f32 %v1276, 1e-05
        %v1278 = vrsqrt.pop %v1277
        %v1279 = vmul.f32 %v1271, %v1278
        %v1280 = vld [vmem:[%s8] sm:$0x1]
        %v1282 = vlaneseq
        %v1283 = vshrl.u32 %v1282, 7
        %v1284 = vsub.s32 0, %v1283
        %v1285 = vrot.slane %v1280, %v1284
        %v1287 = vmul.f32 %v1279, %v1285
        %v1288 = vld [vmem:[%s9] sm:$0x1]
        %v1290 = vlaneseq
        %v1291 = vshrl.u32 %v1290, 7
        %v1292 = vsub.s32 0, %v1291
        %v1293 = vrot.slane %v1288, %v1292
        %v1295 = vadd.f32 %v1287, %v1293
        %v1296 = vpack.c.bf16 %v1295, %v1295
        %v1297 = vld [vmem:[%s10] sm:$0xf]
        %v1298 = vld [vmem:[%s10 + $0x4] sm:$0xf]
        %v1299 = vld [vmem:[%s10 + $0x8] sm:$0xf]
        %v1300 = vld [vmem:[%s10 + $0xc] sm:$0xf]
        %v1301 = vld [vmem:[%s11] sm:$0x1]
        %v1303 = vlaneseq
        %v1304 = vshrl.u32 %v1303, 7
        %v1305 = vsub.s32 0, %v1304
        %v1306 = vrot.slane %v1301, %v1305
        %v1312 = vunpack.c.l.b16 %v1297
        %v1313 = vunpack.c.l.b16 %v1298
        %v1314 = vunpack.c.l.b16 %v1299
        %v1315 = vunpack.c.l.b16 %v1300
        %v1316 = vpack.c.b16 %v1313, %v1312
        %v1317 = vpack.c.b16 %v1315, %v1314
        %v1321 = vsel %vm515, %v1296, 0
        %1323 = vmatprep.subr.bf16.mxu0 0
        %1324 = vmatpush1.bf16.msra.mxu0 0
        %1325 = vmatprep.subr.bf16.mxu0 0
        %1326 = vmatpush1.bf16.msra.mxu0 0
        %1327 = vmatprep.subr.bf16.mxu0 0
        %1328 = vmatpush1.bf16.msra.mxu0 0
        %1329 = vmatprep.subr.bf16.mxu0 0
        %1330 = vmatpush1.bf16.msra.mxu0 0
        %1331 = vmatprep.subr.bf16.mxu0 0
        %1332 = vmatpush1.bf16.msra.mxu0 0
        %1333 = vmatprep.subr.bf16.mxu0 0
        %1334 = vmatpush1.bf16.msra.mxu0 0
        %1335 = vmatprep.subr.bf16.mxu0 0
        %1336 = vmatpush1.bf16.msra.mxu0 %v1317
        %1337 = vmatprep.subr.bf16.mxu0 0
        %1338 = vmatpush1.bf16.msra.mxu0 %v1316
        %1339 = vmatprep.subr.bf16.mxu0 0
        %1340 = vmatpush2.bf16.msra.mxu0 0
        %1341 = vmatprep.subr.bf16.mxu0 0
        %1342 = vmatpush2.bf16.msra.mxu0 0
        %1343 = vmatprep.subr.bf16.mxu0 0
        %1344 = vmatpush2.bf16.msra.mxu0 0
        %1345 = vmatprep.subr.bf16.mxu0 0
        %1346 = vmatpush2.bf16.msra.mxu0 0
        %1347 = vmatprep.subr.bf16.mxu0 0
        %1348 = vmatpush2.bf16.msra.mxu0 0
        %1349 = vmatprep.subr.bf16.mxu0 0
        %1350 = vmatpush2.bf16.msra.mxu0 0
        %1351 = vmatprep.subr.bf16.mxu0 0
        %1352 = vmatpush2.bf16.msra.mxu0 0
        %1353 = vmatprep.subr.bf16.mxu0 0
        %1354 = vmatpush2.bf16.msra.mxu0 0
        %1355 = vmatprep.mubr.bf16.mxu0 0
        %1356 = vmatmul.mubr.bf16.gmra.mxu0 %v1321
        %v1357 = vpop.f32.mrf.mxu0
        %v1358 = vadd.f32 %v1306, %v1357
        %v1359 = vpop.f32.mrf.mxu0
        %v1360 = vpop.f32.mrf.mxu0
        %v1361 = vpop.f32.mrf.mxu0
        %1362 = vdwg.mxu0
        %v1363 = vmul.f32 %v1358, 1.702
        %v1364 = vxor.u32 %v1363, 2147483648
        %v1365 = vmul.f32 %v1364, 1.442695
        %v1366 = vpow.pop %v1365
        %v1367 = vadd.f32 %v1366, 1.0
        %v1368 = vrcp.pop %v1367
        %v1369 = vmul.f32 1.0, %v1368
        %v1370 = vmul.f32 %v1358, %v1369
        %v1371 = vpack.c.bf16 %v1370, %v1370
        %v1372 = vld [vmem:[%s12] sm:$0xf]
        %v1373 = vld [vmem:[%s12 + $0x4] sm:$0xf]
        %v1374 = vld [vmem:[%s12 + $0x8] sm:$0xf]
        %v1375 = vld [vmem:[%s12 + $0xc] sm:$0xf]
        %v1376 = vld [vmem:[%s12 + $0x10] sm:$0xf]
        %v1377 = vld [vmem:[%s12 + $0x14] sm:$0xf]
        %v1378 = vld [vmem:[%s12 + $0x18] sm:$0xf]
        %v1379 = vld [vmem:[%s12 + $0x1c] sm:$0xf]
        %v1380 = vld [vmem:[%s12 + $0x20] sm:$0xf]
        %v1381 = vld [vmem:[%s12 + $0x24] sm:$0xf]
        %v1382 = vld [vmem:[%s12 + $0x28] sm:$0xf]
        %v1383 = vld [vmem:[%s12 + $0x2c] sm:$0xf]
        %v1384 = vld [vmem:[%s12 + $0x30] sm:$0xf]
        %v1385 = vld [vmem:[%s12 + $0x34] sm:$0xf]
        %v1386 = vld [vmem:[%s12 + $0x38] sm:$0xf]
        %v1387 = vld [vmem:[%s12 + $0x3c] sm:$0xf]
        %v1388 = vld [vmem:[%s13] sm:$0x1]
        %v1390 = vlaneseq
        %v1391 = vshrl.u32 %v1390, 7
        %v1392 = vsub.s32 0, %v1391
        %v1393 = vrot.slane %v1388, %v1392
        %v1411 = vunpack.c.l.b16 %v1372
        %v1412 = vunpack.c.l.b16 %v1373
        %v1413 = vunpack.c.l.b16 %v1374
        %v1414 = vunpack.c.l.b16 %v1375
        %v1415 = vunpack.c.l.b16 %v1376
        %v1416 = vunpack.c.l.b16 %v1377
        %v1417 = vunpack.c.l.b16 %v1378
        %v1418 = vunpack.c.l.b16 %v1379
        %v1419 = vunpack.c.l.b16 %v1380
        %v1420 = vunpack.c.l.b16 %v1381
        %v1421 = vunpack.c.l.b16 %v1382
        %v1422 = vunpack.c.l.b16 %v1383
        %v1423 = vunpack.c.l.b16 %v1384
        %v1424 = vunpack.c.l.b16 %v1385
        %v1425 = vunpack.c.l.b16 %v1386
        %v1426 = vunpack.c.l.b16 %v1387
        %v1427 = vpack.c.b16 %v1412, %v1411
        %v1428 = vpack.c.b16 %v1414, %v1413
        %v1429 = vpack.c.b16 %v1416, %v1415
        %v1430 = vpack.c.b16 %v1418, %v1417
        %v1431 = vpack.c.b16 %v1420, %v1419
        %v1432 = vpack.c.b16 %v1422, %v1421
        %v1433 = vpack.c.b16 %v1424, %v1423
        %v1434 = vpack.c.b16 %v1426, %v1425
        %1443 = vmatprep.subr.bf16.mxu0 0
        %1444 = vmatpush1.bf16.msra.mxu0 %v1434
        %1445 = vmatprep.subr.bf16.mxu0 0
        %1446 = vmatpush1.bf16.msra.mxu0 %v1433
        %1447 = vmatprep.subr.bf16.mxu0 0
        %1448 = vmatpush1.bf16.msra.mxu0 %v1432
        %1449 = vmatprep.subr.bf16.mxu0 0
        %1450 = vmatpush1.bf16.msra.mxu0 %v1431
        %1451 = vmatprep.subr.bf16.mxu0 0
        %1452 = vmatpush1.bf16.msra.mxu0 %v1430
        %1453 = vmatprep.subr.bf16.mxu0 0
        %1454 = vmatpush1.bf16.msra.mxu0 %v1429
        %1455 = vmatprep.subr.bf16.mxu0 0
        %1456 = vmatpush1.bf16.msra.mxu0 %v1428
        %1457 = vmatprep.subr.bf16.mxu0 0
        %1458 = vmatpush1.bf16.msra.mxu0 %v1427
        %1459 = vmatprep.subr.bf16.mxu0 0
        %1460 = vmatpush2.bf16.msra.mxu0 0
        %1461 = vmatprep.subr.bf16.mxu0 0
        %1462 = vmatpush2.bf16.msra.mxu0 0
        %1463 = vmatprep.subr.bf16.mxu0 0
        %1464 = vmatpush2.bf16.msra.mxu0 0
        %1465 = vmatprep.subr.bf16.mxu0 0
        %1466 = vmatpush2.bf16.msra.mxu0 0
        %1467 = vmatprep.subr.bf16.mxu0 0
        %1468 = vmatpush2.bf16.msra.mxu0 0
        %1469 = vmatprep.subr.bf16.mxu0 0
        %1470 = vmatpush2.bf16.msra.mxu0 0
        %1471 = vmatprep.subr.bf16.mxu0 0
        %1472 = vmatpush2.bf16.msra.mxu0 0
        %1473 = vmatprep.subr.bf16.mxu0 0
        %1474 = vmatpush2.bf16.msra.mxu0 0
        %1475 = vmatprep.mubr.bf16.mxu0 0
        %1476 = vmatmul.mubr.bf16.gmra.mxu0 %v1371
        %v1477 = vpop.f32.mrf.mxu0
        %v1478 = vadd.f32 %v1393, %v1477
        %v1479 = vpop.f32.mrf.mxu0
        %v1480 = vpop.f32.mrf.mxu0
        %v1481 = vpop.f32.mrf.mxu0
        %1482 = vdwg.mxu0
        %v1483 = vadd.f32 %v1266, %v1478
        %1484 = vst.msk [vmem:[%s496] sm:$0xff] %vm515, %v1483
        %s1485 = sld [smem:[#allocation3 + %s40]]
        %s1486 = scalar_lea.vmem %s496, %s1485 [#allocation4]
        %v1487 = vld [vmem:[%s1486] sm:$0x1]
        %v1488 = vsel %vm515, %v1483, 0.0
        %v1489 = vrot.slane %v1488, 4
        %v1490 = vadd.f32 %v1488, %v1489
        %v1491 = vrot.slane %v1490, 2
        %v1492 = vadd.f32 %v1490, %v1491
        %v1493 = vrot.slane %v1492, 1
        %v1494 = vadd.f32 %v1492, %v1493
        %vm1495 = vcmask 253952
        %1496 = vst.msk [vmem:[%s502] sm:$0x1] %vm1495, %v1487
        %v1497 = vsub.f32 %v1494, %v1487
        %v1498 = vrcp.pop 7.0
        %v1499 = vmul.f32 %v1497, %v1498
        %1500 = vst.msk [vmem:[%s508] sm:$0x1] %vm1495, %v1499
        %s1501 = sand.u32 %s326, 1
        %s1502 = scalar_lea.sflag [#allocation5], %s1501
        %s1503 = sand.u32 %s326, 1
        %s1504 = smul.addr %s1503, 8
        %s1505 = scalar_lea.vmem [#allocation4], %s1504
        %s1506 = sand.u32 %s40, 1
        %s1507 = scalar_lea.sflag [#allocation7], %s1506
        %s1508 = sand.u32 %s352, 1
        %s1509 = scalar_lea.vmem [#allocation6], %s1508
        %s1510 = sand.u32 %s40, 1
        %s1511 = scalar_lea.sflag [#allocation7], %s1510
        %s1512 = sand.u32 %s378, 1
        %s1513 = scalar_lea.vmem [#allocation8], %s1512
        // Predicated region
        $region73: #{tpu_custom_call.1} parent=71 // pred_check
          %p1514 = pneg %p336
        $region74: #{tpu_custom_call.1} parent=71 // pred_check_branch
          %1516 = sbr.rel (%p1514) target = $region76
        $region75: #{tpu_custom_call.1} parent=71 // pred_region
          %s1518 = ssub.s32 128, 128
          %1519 = vsyncadd %s1502, %s1518
          %s1520 = smul.addr %s40, 128
          %s1521 = scalar_lea.hbm %s14, %s1520
          %s1523 = sshll.u32 %s1505, 4
          %s1524 = int_to_ptr.vmem [resolvable:$true] %s1523
          %1526 = dma.vmem_to_hbm [thread:$0]  %s1524, 128, %s1521, %s1502
        $region76: #{tpu_custom_call.1} parent=71 // pred_fallthru
          _
        // Predicated region
        $region77: #{tpu_custom_call.1} parent=71 // pred_check
          %p1527 = pneg %p362
        $region78: #{tpu_custom_call.1} parent=71 // pred_check_branch
          %1529 = sbr.rel (%p1527) target = $region80
        $region79: #{tpu_custom_call.1} parent=71 // pred_region
          %s1531 = ssub.s32 16, 16
          %1532 = vsyncadd %s1507, %s1531
          %s1533 = smul.addr %s40, 16
          %s1534 = scalar_lea.hbm %s15, %s1533
          %s1536 = sshll.u32 %s1509, 4
          %s1537 = int_to_ptr.vmem [resolvable:$true] %s1536
          %1539 = dma.vmem_to_hbm [thread:$0]  %s1537, 16, %s1534, %s1507
        $region80: #{tpu_custom_call.1} parent=71 // pred_fallthru
          _
        // Predicated region
        $region81: #{tpu_custom_call.1} parent=71 // pred_check
          %p1540 = pneg %p388
        $region82: #{tpu_custom_call.1} parent=71 // pred_check_branch
          %1542 = sbr.rel (%p1540) target = $region84
        $region83: #{tpu_custom_call.1} parent=71 // pred_region
          %s1544 = ssub.s32 16, 16
          %1545 = vsyncadd %s1511, %s1544
          %s1546 = smul.addr %s40, 16
          %s1547 = scalar_lea.hbm %s16, %s1546
          %s1549 = sshll.u32 %s1513, 4
          %s1550 = int_to_ptr.vmem [resolvable:$true] %s1549
          %1552 = dma.vmem_to_hbm [thread:$0]  %s1550, 16, %s1547, %s1511
        $region84: #{tpu_custom_call.1} parent=71 // pred_fallthru
          _
      $region72: #{tpu_custom_call.1} parent=5 // pred_fallthru
        _
      %p1553 = scmp.le.s32.totalorder 2, %s35
      // Predicated region
      $region85: #{tpu_custom_call.1} parent=5 // pred_check
        %p1554 = pneg %p1553
      $region86: #{tpu_custom_call.1} parent=5 // pred_check_branch
        %1556 = sbr.rel (%p1554) target = $region88
      $region87: #{tpu_custom_call.1} parent=5 // pred_region
        %s1557 = ssub.s32 %s35, 2
        // Predicated region
        $region89: #{tpu_custom_call.1} parent=87 // pred_check
          %p1558 = pneg %p342
        $region90: #{tpu_custom_call.1} parent=87 // pred_check_branch
          %1560 = sbr.rel (%p1558) target = $region92
        $region91: #{tpu_custom_call.1} parent=87 // pred_region
          %s1561 = sand.u32 %s327, 1
          %s1562 = scalar_lea.sflag [#allocation5], %s1561
          %s1563 = sand.u32 %s327, 1
          %s1564 = smul.addr %s1563, 8
          %s1565 = scalar_lea.vmem [#allocation4], %s1564
          %1566 = dma.done %s1562, 128
        $region92: #{tpu_custom_call.1} parent=87 // pred_fallthru
          _
        // Predicated region
        $region93: #{tpu_custom_call.1} parent=87 // pred_check
          %p1567 = pneg %p368
        $region94: #{tpu_custom_call.1} parent=87 // pred_check_branch
          %1569 = sbr.rel (%p1567) target = $region96
        $region95: #{tpu_custom_call.1} parent=87 // pred_region
          %s1570 = sand.u32 %s41, 1
          %s1571 = scalar_lea.sflag [#allocation7], %s1570
          %s1572 = sand.u32 %s353, 1
          %s1573 = scalar_lea.vmem [#allocation6], %s1572
          %1574 = dma.done %s1571, 16
        $region96: #{tpu_custom_call.1} parent=87 // pred_fallthru
          _
        // Predicated region
        $region97: #{tpu_custom_call.1} parent=87 // pred_check
          %p1575 = pneg %p394
        $region98: #{tpu_custom_call.1} parent=87 // pred_check_branch
          %1577 = sbr.rel (%p1575) target = $region100
        $region99: #{tpu_custom_call.1} parent=87 // pred_region
          %s1578 = sand.u32 %s41, 1
          %s1579 = scalar_lea.sflag [#allocation7], %s1578
          %s1580 = sand.u32 %s379, 1
          %s1581 = scalar_lea.vmem [#allocation8], %s1580
          %1582 = dma.done %s1579, 16
        $region100: #{tpu_custom_call.1} parent=87 // pred_fallthru
          _
      $region88: #{tpu_custom_call.1} parent=5 // pred_fallthru
        _
    $region6: #{tpu_custom_call.1} parent=1 // loop_footer
      %s39 = sadd.s32 1, %s35
    $region7: #{tpu_custom_call.1} parent=1 // loop_footer_branch
      %34 = sbr.rel target = $region3
    $region8: #{tpu_custom_call.1} parent=1 // loop_exit
      _
    %1583 = vsyncpa [#allocation5], 1
    %s1584 = scalar_lea.sflag [#allocation5], 1
    %1585 = vsyncpa %s1584, 1
    %1586 = vsyncpa [#allocation7], 1
    %s1587 = scalar_lea.sflag [#allocation7], 1
    %1588 = vsyncpa %s1587, 1

</llo_original>
